<compile_context>
chip_gen: v5e
topology: v5e:2x2
jax: 0.10.0
libtpu: 0.0.40
codegen_flags: <defaults>
</compile_context>

<pallas_src>
import functools
from itertools import combinations

import jax
import jax.numpy as jnp
from jax.experimental import pallas as pl
from jax.experimental.pallas import tpu as pltpu

VMEM_SPEC = pl.BlockSpec(memory_space=pltpu.MemorySpace.VMEM)
LN_EPS = 1e-5
LANE = 128
SUBLANE = 8
VMEM_CEILING = 52 * 1024 * 1024      # stay under v7x's 64 MiB per-TC VMEM


def _round_up(n, m):
    return ((n + m - 1) // m) * m


def _pad2d(x, rows, cols, dtype=None):
    r, c = x.shape
    out = jnp.pad(x, ((0, rows - r), (0, cols - c)))
    return out.astype(dtype) if dtype is not None else out


# ---------------------------------------------------------------------------
# Kernel 1: fused TAGConv stack, adjacency VMEM-resident
# ---------------------------------------------------------------------------
def _tagconv_stack_kernel(a_ref, x_ref, *rest, num_layers, K, f_real, eps):
    o_ref = rest[-1]
    layer_refs = rest[:-1]

    a = a_ref[...]                                    # (Np, Np) bf16, resident
    h = x_ref[...]                                    # (Np, Fp) bf16, hop 0
    fpad = o_ref.shape[-1]
    lane_id = jax.lax.broadcasted_iota(jnp.int32, (1, fpad), 1)
    lane_mask = (lane_id < f_real).astype(jnp.float32)     # hoisted once
    inv_f = 1.0 / float(f_real)

    for li in range(num_layers):
        w_ref, b_ref, g_ref, be_ref = layer_refs[4 * li: 4 * li + 4]
        # TAGConv: y = sum_{k=0..K} (A^k h) @ W_k  -- per-hop dots, no concat.
        hop = h                                        # bf16 (Np, Fp)
        y = jnp.dot(hop, w_ref[0], preferred_element_type=jnp.float32)
        for k in range(1, K + 1):
            hop = jnp.dot(a, hop,
                          preferred_element_type=jnp.float32).astype(jnp.bfloat16)
            y = y + jnp.dot(hop, w_ref[k], preferred_element_type=jnp.float32)
        y = y + b_ref[...]
        y = jnp.maximum(y, 0.0)                        # ReLU (dropout p=0)
        # Two-pass LayerNorm over the f_real real features (padded lanes are 0
        # pre-LN; the centered values on padded lanes are excluded by the mask
        # and zeroed on output because gamma/beta are zero-padded).
        mean = jnp.sum(y, axis=-1, keepdims=True) * inv_f
        centered = y - mean
        cm = centered * lane_mask
        var = jnp.sum(cm * cm, axis=-1, keepdims=True) * inv_f
        normed = centered * jax.lax.rsqrt(var + eps)
        h = (normed * g_ref[...] + be_ref[...]).astype(jnp.bfloat16)

    o_ref[...] = h


def tagconv_stack(a_bf16, x_pad, layer_params, K, hidden_features):
    n_pad, fpad = x_pad.shape
    num_layers = len(layer_params)
    flat = []
    for lp in layer_params:
        flat += [lp["w"], lp["b"], lp["gamma"], lp["beta"]]

    # VMEM residency budget: whole-array operands + f32 hop/acc temporaries.
    need = (a_bf16.size * 2 + 2 * x_pad.size * 2
            + sum(int(t.size) * t.dtype.itemsize for t in flat)
            + 4 * n_pad * fpad * 4)
    assert need + (8 << 20) <= VMEM_CEILING, (
        "adjacency too large for VMEM residency; add the streamed fallback")
    vmem_limit = min(VMEM_CEILING, max(32 << 20, need + (8 << 20)))

    return pl.pallas_call(
        functools.partial(_tagconv_stack_kernel, num_layers=num_layers, K=K,
                          f_real=hidden_features, eps=LN_EPS),
        out_shape=jax.ShapeDtypeStruct((n_pad, fpad), jnp.bfloat16),
        in_specs=[VMEM_SPEC] * (2 + 4 * num_layers),
        out_specs=VMEM_SPEC,
        compiler_params=pltpu.CompilerParams(vmem_limit_bytes=vmem_limit),
    )(a_bf16, x_pad, *flat)


# ---------------------------------------------------------------------------
# Kernel 2: pool (pairwise-abs-diff / mean / max) + merger + FFN head
# (lane-dense: 8-row / 128-lane padded in/out, pre-sliced merger weights)
# ---------------------------------------------------------------------------
def _pool_head_kernel(xg_ref, wmd_ref, wmm_ref, wmx_ref, bm_ref,
                      w1_ref, b1_ref, w2_ref, b2_ref, o_ref, *, set_size):
    xg = xg_ref[...].astype(jnp.float32)               # (Gp, S, Hp)
    if set_size == 1:
        pooled = xg[:, 0, :]                           # squeeze; merger skipped
    else:
        x_diff = jnp.zeros_like(xg[:, 0, :])
        for i, j in combinations(range(set_size), 2):
            x_diff = x_diff + jnp.abs(xg[:, i, :] - xg[:, j, :])
        x_mean = jnp.mean(xg, axis=1)
        x_max = jnp.max(xg, axis=1)
        pooled = (jnp.dot(x_diff.astype(jnp.bfloat16), wmd_ref[...],
                          preferred_element_type=jnp.float32)
                  + jnp.dot(x_mean.astype(jnp.bfloat16), wmm_ref[...],
                            preferred_element_type=jnp.float32)
                  + jnp.dot(x_max.astype(jnp.bfloat16), wmx_ref[...],
                            preferred_element_type=jnp.float32)
                  + bm_ref[...])
    # FeedForwardNetwork: Linear(H,H) -> ReLU -> (dropout p=0) -> Linear(H,O)
    h = jnp.dot(pooled.astype(jnp.bfloat16), w1_ref[...],
                preferred_element_type=jnp.float32) + b1_ref[...]
    h = jnp.maximum(h, 0.0)
    out = jnp.dot(h.astype(jnp.bfloat16), w2_ref[...],
                  preferred_element_type=jnp.float32) + b2_ref[...]
    o_ref[...] = out


def pool_head(xg_pad, wmd, wmm, wmx, bm, w1, b1, w2, b2, set_size):
    gp = xg_pad.shape[0]
    opad = w2.shape[-1]
    return pl.pallas_call(
        functools.partial(_pool_head_kernel, set_size=set_size),
        out_shape=jax.ShapeDtypeStruct((gp, opad), jnp.float32),
        in_specs=[VMEM_SPEC] * 9,
        out_specs=VMEM_SPEC,
        compiler_params=pltpu.CompilerParams(vmem_limit_bytes=32 << 20),
    )(xg_pad, wmd, wmm, wmx, bm, w1, b1, w2, b2)


# ---------------------------------------------------------------------------
# Full model wrapper (index math / tiny gather stay in plain JAX)
# ---------------------------------------------------------------------------
def gnn_forward(params, x_pad, a_bf16, set_indices, batch_vec, num_graphs,
                K, hidden_features, out_features):
    h = tagconv_stack(a_bf16, x_pad, params["layers"], K, hidden_features)

    # get_minibatch_embeddings: per-graph index bases + set-node gather
    node_counts = jnp.bincount(batch_vec, length=num_graphs)         # no eye
    index_bases = jnp.concatenate(
        [jnp.zeros((1,), jnp.int32),
         jnp.cumsum(node_counts)[:-1].astype(jnp.int32)])
    set_indices_batch = index_bases[:, None] + set_indices           # (G, S)
    xg = jnp.take(h, set_indices_batch, axis=0)                      # (G, S, Fp)

    gp = _round_up(max(num_graphs, 1), SUBLANE)
    xg_pad = jnp.pad(xg, ((0, gp - num_graphs), (0, 0), (0, 0)))

    out_pad = pool_head(xg_pad, params["merger_wd"], params["merger_wm"],
                        params["merger_wx"], params["merger_b"],
                        params["ffn_w1"], params["ffn_b1"],
                        params["ffn_w2"], params["ffn_b2"],
                        set_indices.shape[-1])
    return out_pad[:num_graphs, :out_features]


# ---------------------------------------------------------------------------
# Deterministic inputs / parameters and a single run
# ---------------------------------------------------------------------------
def build_norm_adj(edge_index, num_nodes, n_pad):
    """Dense D^{-1/2} A D^{-1/2} (TAGConv gcn_norm, no self loops), zero-padded, bf16."""
    src, dst = edge_index
    a = jnp.zeros((num_nodes, num_nodes), jnp.float32).at[src, dst].set(1.0)
    deg = a.sum(axis=1)
    dinv = jnp.where(deg > 0, jax.lax.rsqrt(deg), 0.0)
    a = dinv[:, None] * a * dinv[None, :]
    a = jnp.pad(a, ((0, n_pad - num_nodes), (0, n_pad - num_nodes)))
    return a.astype(jnp.bfloat16)


if __name__ == "__main__":
    # Hyperparameters implied by GNNModel.__init__ (DE-GNN => TAGConv, K hops)
    layers = 2
    in_features = 4
    hidden_features = 32
    out_features = 2
    prop_depth = 2           # K
    num_graphs = 2
    nodes_per_graph = 8
    set_size = 2             # samples are edges -> pairwise pooling path
    N = num_graphs * nodes_per_graph

    n_pad = _round_up(N, LANE)                                   # 128-multiple
    fpad = _round_up(max(in_features, hidden_features), LANE)    # lane-dense
    opad = _round_up(out_features, LANE)

    key = jax.random.PRNGKey(0)
    keys = jax.random.split(key, 16)

    # Node features, zero-padded to (n_pad, fpad), bf16
    x = jax.random.normal(keys[0], (N, in_features), jnp.float32)
    x_pad = _pad2d(x, n_pad, fpad, jnp.bfloat16)

    # Ring graph inside each subgraph, both directions
    src_list, dst_list = [], []
    for g in range(num_graphs):
        base = g * nodes_per_graph
        for i in range(nodes_per_graph):
            u, v = base + i, base + (i + 1) % nodes_per_graph
            src_list += [u, v]
            dst_list += [v, u]
    edge_index = (jnp.array(src_list, jnp.int32), jnp.array(dst_list, jnp.int32))
    a_bf16 = build_norm_adj(edge_index, N, n_pad)

    batch_vec = jnp.repeat(jnp.arange(num_graphs, dtype=jnp.int32), nodes_per_graph)
    set_indices = jnp.array([[0, 3], [1, 5]], jnp.int32)     # local node ids

    # Parameters (deterministic synthetic init), pre-padded lane-dense
    def lin(k, fan_in, fan_out, scale=0.1):
        return scale * jax.random.normal(k, (fan_in, fan_out), jnp.float32)

    layer_params = []
    fin = in_features
    for li in range(layers):
        kw, kb = jax.random.split(keys[1 + li])
        w = 0.1 * jax.random.normal(kw, (prop_depth + 1, fin, hidden_features),
                                    jnp.float32)
        w_pad = jnp.pad(w, ((0, 0), (0, fpad - fin), (0, fpad - hidden_features)))
        b = 0.1 * jax.random.normal(kb, (1, hidden_features), jnp.float32)
        layer_params.append({
            "w": w_pad.astype(jnp.bfloat16),                         # (K+1,Fp,Fp)
            "b": _pad2d(b, 1, fpad),                                 # pad lanes 0
            "gamma": _pad2d(jnp.ones((1, hidden_features), jnp.float32), 1, fpad),
            "beta": _pad2d(jnp.zeros((1, hidden_features), jnp.float32), 1, fpad),
        })
        fin = hidden_features

    merger_w = lin(keys[8], 3 * hidden_features, hidden_features)
    params = {
        "layers": layer_params,
        # merger weight pre-sliced (diff / mean / max) -> no lane-axis concat
        "merger_wd": _pad2d(merger_w[:hidden_features], fpad, fpad, jnp.bfloat16),
        "merger_wm": _pad2d(merger_w[hidden_features:2 * hidden_features],
                            fpad, fpad, jnp.bfloat16),
        "merger_wx": _pad2d(merger_w[2 * hidden_features:], fpad, fpad, jnp.bfloat16),
        "merger_b": _pad2d(0.1 * jax.random.normal(keys[9], (1, hidden_features),
                                                   jnp.float32), 1, fpad),
        "ffn_w1": _pad2d(lin(keys[10], hidden_features, hidden_features),
                         fpad, fpad, jnp.bfloat16),
        "ffn_b1": _pad2d(0.1 * jax.random.normal(keys[11], (1, hidden_features),
                                                 jnp.float32), 1, fpad),
        "ffn_w2": _pad2d(lin(keys[12], hidden_features, out_features),
                         fpad, opad, jnp.bfloat16),
        "ffn_b2": _pad2d(0.1 * jax.random.normal(keys[13], (1, out_features),
                                                 jnp.float32), 1, opad),
    }

    out = gnn_forward(params, x_pad, a_bf16, set_indices, batch_vec,
                      num_graphs, prop_depth, hidden_features, out_features)
    out = jax.block_until_ready(out)
    assert out.shape == (num_graphs, out_features)
    print("KERNEL_OK")
</pallas_src>

<mosaic_0001>
module attributes {stable_mosaic.version = 11 : i64} {
  func.func @_tagconv_stack_kernel(%arg0: memref<128x128xbf16, #tpu.memory_space<vmem>>, %arg1: memref<128x128xbf16, #tpu.memory_space<vmem>>, %arg2: memref<3x128x128xbf16, #tpu.memory_space<vmem>>, %arg3: memref<1x128xf32, #tpu.memory_space<vmem>>, %arg4: memref<1x128xf32, #tpu.memory_space<vmem>>, %arg5: memref<1x128xf32, #tpu.memory_space<vmem>>, %arg6: memref<3x128x128xbf16, #tpu.memory_space<vmem>>, %arg7: memref<1x128xf32, #tpu.memory_space<vmem>>, %arg8: memref<1x128xf32, #tpu.memory_space<vmem>>, %arg9: memref<1x128xf32, #tpu.memory_space<vmem>>, %arg10: memref<128x128xbf16, #tpu.memory_space<vmem>>) attributes {dimension_semantics = [], scalar_prefetch = 0 : i64, scratch_operands = 0 : i64, tpu.core_type = #tpu.core_type<tc>} {
    %c0 = arith.constant 0 : index
    %c0_0 = arith.constant 0 : index
    %0 = vector.load %arg0[%c0, %c0_0] : memref<128x128xbf16, #tpu.memory_space<vmem>>, vector<128x128xbf16>
    %c0_1 = arith.constant 0 : index
    %c0_2 = arith.constant 0 : index
    %1 = vector.load %arg1[%c0_1, %c0_2] : memref<128x128xbf16, #tpu.memory_space<vmem>>, vector<128x128xbf16>
    %2 = tpu.iota {dimensions = array<i32: 1>} : vector<1x128xi32>
    %c32_i32 = arith.constant 32 : i32
    %3 = vector.broadcast %c32_i32 : i32 to vector<1x128xi32>
    %4 = arith.cmpi slt, %2, %3 : vector<1x128xi32>
    %5 = arith.extui %4 : vector<1x128xi1> to vector<1x128xi32>
    %6 = arith.sitofp %5 : vector<1x128xi32> to vector<1x128xf32>
    %c0_3 = arith.constant 0 : index
    %c0_4 = arith.constant 0 : index
    %c0_5 = arith.constant 0 : index
    %7 = vector.load %arg2[%c0_3, %c0_4, %c0_5] : memref<3x128x128xbf16, #tpu.memory_space<vmem>>, vector<1x128x128xbf16>
    %8 = vector.shape_cast %7 : vector<1x128x128xbf16> to vector<128x128xbf16>
    %cst = arith.constant dense<0.000000e+00> : vector<128x128xf32>
    %9 = tpu.matmul %1, %8, %cst {dimension_numbers = #tpu.dot_dimension_numbers<[1], [0], [0], [1], [0, 0, 1, 1], [], []>} : vector<128x128xbf16>, vector<128x128xbf16>, vector<128x128xf32> -> vector<128x128xf32>
    %cst_6 = arith.constant dense<0.000000e+00> : vector<128x128xf32>
    %10 = tpu.matmul %0, %1, %cst_6 {dimension_numbers = #tpu.dot_dimension_numbers<[1], [0], [0], [1], [0, 0, 1, 1], [], []>} : vector<128x128xbf16>, vector<128x128xbf16>, vector<128x128xf32> -> vector<128x128xf32>
    %11 = arith.truncf %10 : vector<128x128xf32> to vector<128x128xbf16>
    %c1 = arith.constant 1 : index
    %c0_7 = arith.constant 0 : index
    %c0_8 = arith.constant 0 : index
    %12 = vector.load %arg2[%c1, %c0_7, %c0_8] : memref<3x128x128xbf16, #tpu.memory_space<vmem>>, vector<1x128x128xbf16>
    %13 = vector.shape_cast %12 : vector<1x128x128xbf16> to vector<128x128xbf16>
    %cst_9 = arith.constant dense<0.000000e+00> : vector<128x128xf32>
    %14 = tpu.matmul %11, %13, %cst_9 {dimension_numbers = #tpu.dot_dimension_numbers<[1], [0], [0], [1], [0, 0, 1, 1], [], []>} : vector<128x128xbf16>, vector<128x128xbf16>, vector<128x128xf32> -> vector<128x128xf32>
    %15 = arith.addf %9, %14 : vector<128x128xf32>
    %cst_10 = arith.constant dense<0.000000e+00> : vector<128x128xf32>
    %16 = tpu.matmul %0, %11, %cst_10 {dimension_numbers = #tpu.dot_dimension_numbers<[1], [0], [0], [1], [0, 0, 1, 1], [], []>} : vector<128x128xbf16>, vector<128x128xbf16>, vector<128x128xf32> -> vector<128x128xf32>
    %17 = arith.truncf %16 : vector<128x128xf32> to vector<128x128xbf16>
    %c2 = arith.constant 2 : index
    %c0_11 = arith.constant 0 : index
    %c0_12 = arith.constant 0 : index
    %18 = vector.load %arg2[%c2, %c0_11, %c0_12] : memref<3x128x128xbf16, #tpu.memory_space<vmem>>, vector<1x128x128xbf16>
    %19 = vector.shape_cast %18 : vector<1x128x128xbf16> to vector<128x128xbf16>
    %cst_13 = arith.constant dense<0.000000e+00> : vector<128x128xf32>
    %20 = tpu.matmul %17, %19, %cst_13 {dimension_numbers = #tpu.dot_dimension_numbers<[1], [0], [0], [1], [0, 0, 1, 1], [], []>} : vector<128x128xbf16>, vector<128x128xbf16>, vector<128x128xf32> -> vector<128x128xf32>
    %21 = arith.addf %15, %20 : vector<128x128xf32>
    %c0_14 = arith.constant 0 : index
    %c0_15 = arith.constant 0 : index
    %22 = vector.load %arg3[%c0_14, %c0_15] : memref<1x128xf32, #tpu.memory_space<vmem>>, vector<1x128xf32>
    %23 = vector.broadcast %22 : vector<1x128xf32> to vector<128x128xf32>
    %24 = arith.addf %21, %23 : vector<128x128xf32>
    %cst_16 = arith.constant 0.000000e+00 : f32
    %25 = vector.broadcast %cst_16 : f32 to vector<128x128xf32>
    %26 = arith.maximumf %24, %25 : vector<128x128xf32>
    %cst_17 = arith.constant dense<0.000000e+00> : vector<128xf32>
    %27 = vector.multi_reduction <add>, %26, %cst_17 [1] : vector<128x128xf32> to vector<128xf32>
    %28 = vector.shape_cast %27 : vector<128xf32> to vector<128x1xf32>
    %cst_18 = arith.constant 3.125000e-02 : f32
    %29 = vector.broadcast %cst_18 : f32 to vector<128x1xf32>
    %30 = arith.mulf %28, %29 : vector<128x1xf32>
    %31 = vector.broadcast %30 : vector<128x1xf32> to vector<128x128xf32>
    %32 = arith.subf %26, %31 : vector<128x128xf32>
    %33 = vector.broadcast %6 : vector<1x128xf32> to vector<128x128xf32>
    %34 = arith.mulf %32, %33 : vector<128x128xf32>
    %35 = arith.mulf %34, %34 : vector<128x128xf32>
    %cst_19 = arith.constant dense<0.000000e+00> : vector<128xf32>
    %36 = vector.multi_reduction <add>, %35, %cst_19 [1] : vector<128x128xf32> to vector<128xf32>
    %37 = vector.shape_cast %36 : vector<128xf32> to vector<128x1xf32>
    %cst_20 = arith.constant 3.125000e-02 : f32
    %38 = vector.broadcast %cst_20 : f32 to vector<128x1xf32>
    %39 = arith.mulf %37, %38 : vector<128x1xf32>
    %cst_21 = arith.constant 9.99999974E-6 : f32
    %40 = vector.broadcast %cst_21 : f32 to vector<128x1xf32>
    %41 = arith.addf %39, %40 : vector<128x1xf32>
    %42 = math.rsqrt %41 : vector<128x1xf32>
    %43 = vector.broadcast %42 : vector<128x1xf32> to vector<128x128xf32>
    %44 = arith.mulf %32, %43 : vector<128x128xf32>
    %c0_22 = arith.constant 0 : index
    %c0_23 = arith.constant 0 : index
    %45 = vector.load %arg4[%c0_22, %c0_23] : memref<1x128xf32, #tpu.memory_space<vmem>>, vector<1x128xf32>
    %46 = vector.broadcast %45 : vector<1x128xf32> to vector<128x128xf32>
    %47 = arith.mulf %44, %46 : vector<128x128xf32>
    %c0_24 = arith.constant 0 : index
    %c0_25 = arith.constant 0 : index
    %48 = vector.load %arg5[%c0_24, %c0_25] : memref<1x128xf32, #tpu.memory_space<vmem>>, vector<1x128xf32>
    %49 = vector.broadcast %48 : vector<1x128xf32> to vector<128x128xf32>
    %50 = arith.addf %47, %49 : vector<128x128xf32>
    %51 = arith.truncf %50 : vector<128x128xf32> to vector<128x128xbf16>
    %c0_26 = arith.constant 0 : index
    %c0_27 = arith.constant 0 : index
    %c0_28 = arith.constant 0 : index
    %52 = vector.load %arg6[%c0_26, %c0_27, %c0_28] : memref<3x128x128xbf16, #tpu.memory_space<vmem>>, vector<1x128x128xbf16>
    %53 = vector.shape_cast %52 : vector<1x128x128xbf16> to vector<128x128xbf16>
    %cst_29 = arith.constant dense<0.000000e+00> : vector<128x128xf32>
    %54 = tpu.matmul %51, %53, %cst_29 {dimension_numbers = #tpu.dot_dimension_numbers<[1], [0], [0], [1], [0, 0, 1, 1], [], []>} : vector<128x128xbf16>, vector<128x128xbf16>, vector<128x128xf32> -> vector<128x128xf32>
    %cst_30 = arith.constant dense<0.000000e+00> : vector<128x128xf32>
    %55 = tpu.matmul %0, %51, %cst_30 {dimension_numbers = #tpu.dot_dimension_numbers<[1], [0], [0], [1], [0, 0, 1, 1], [], []>} : vector<128x128xbf16>, vector<128x128xbf16>, vector<128x128xf32> -> vector<128x128xf32>
    %56 = arith.truncf %55 : vector<128x128xf32> to vector<128x128xbf16>
    %c1_31 = arith.constant 1 : index
    %c0_32 = arith.constant 0 : index
    %c0_33 = arith.constant 0 : index
    %57 = vector.load %arg6[%c1_31, %c0_32, %c0_33] : memref<3x128x128xbf16, #tpu.memory_space<vmem>>, vector<1x128x128xbf16>
    %58 = vector.shape_cast %57 : vector<1x128x128xbf16> to vector<128x128xbf16>
    %cst_34 = arith.constant dense<0.000000e+00> : vector<128x128xf32>
    %59 = tpu.matmul %56, %58, %cst_34 {dimension_numbers = #tpu.dot_dimension_numbers<[1], [0], [0], [1], [0, 0, 1, 1], [], []>} : vector<128x128xbf16>, vector<128x128xbf16>, vector<128x128xf32> -> vector<128x128xf32>
    %60 = arith.addf %54, %59 : vector<128x128xf32>
    %cst_35 = arith.constant dense<0.000000e+00> : vector<128x128xf32>
    %61 = tpu.matmul %0, %56, %cst_35 {dimension_numbers = #tpu.dot_dimension_numbers<[1], [0], [0], [1], [0, 0, 1, 1], [], []>} : vector<128x128xbf16>, vector<128x128xbf16>, vector<128x128xf32> -> vector<128x128xf32>
    %62 = arith.truncf %61 : vector<128x128xf32> to vector<128x128xbf16>
    %c2_36 = arith.constant 2 : index
    %c0_37 = arith.constant 0 : index
    %c0_38 = arith.constant 0 : index
    %63 = vector.load %arg6[%c2_36, %c0_37, %c0_38] : memref<3x128x128xbf16, #tpu.memory_space<vmem>>, vector<1x128x128xbf16>
    %64 = vector.shape_cast %63 : vector<1x128x128xbf16> to vector<128x128xbf16>
    %cst_39 = arith.constant dense<0.000000e+00> : vector<128x128xf32>
    %65 = tpu.matmul %62, %64, %cst_39 {dimension_numbers = #tpu.dot_dimension_numbers<[1], [0], [0], [1], [0, 0, 1, 1], [], []>} : vector<128x128xbf16>, vector<128x128xbf16>, vector<128x128xf32> -> vector<128x128xf32>
    %66 = arith.addf %60, %65 : vector<128x128xf32>
    %c0_40 = arith.constant 0 : index
    %c0_41 = arith.constant 0 : index
    %67 = vector.load %arg7[%c0_40, %c0_41] : memref<1x128xf32, #tpu.memory_space<vmem>>, vector<1x128xf32>
    %68 = vector.broadcast %67 : vector<1x128xf32> to vector<128x128xf32>
    %69 = arith.addf %66, %68 : vector<128x128xf32>
    %cst_42 = arith.constant 0.000000e+00 : f32
    %70 = vector.broadcast %cst_42 : f32 to vector<128x128xf32>
    %71 = arith.maximumf %69, %70 : vector<128x128xf32>
    %cst_43 = arith.constant dense<0.000000e+00> : vector<128xf32>
    %72 = vector.multi_reduction <add>, %71, %cst_43 [1] : vector<128x128xf32> to vector<128xf32>
    %73 = vector.shape_cast %72 : vector<128xf32> to vector<128x1xf32>
    %cst_44 = arith.constant 3.125000e-02 : f32
    %74 = vector.broadcast %cst_44 : f32 to vector<128x1xf32>
    %75 = arith.mulf %73, %74 : vector<128x1xf32>
    %76 = vector.broadcast %75 : vector<128x1xf32> to vector<128x128xf32>
    %77 = arith.subf %71, %76 : vector<128x128xf32>
    %78 = vector.broadcast %6 : vector<1x128xf32> to vector<128x128xf32>
    %79 = arith.mulf %77, %78 : vector<128x128xf32>
    %80 = arith.mulf %79, %79 : vector<128x128xf32>
    %cst_45 = arith.constant dense<0.000000e+00> : vector<128xf32>
    %81 = vector.multi_reduction <add>, %80, %cst_45 [1] : vector<128x128xf32> to vector<128xf32>
    %82 = vector.shape_cast %81 : vector<128xf32> to vector<128x1xf32>
    %cst_46 = arith.constant 3.125000e-02 : f32
    %83 = vector.broadcast %cst_46 : f32 to vector<128x1xf32>
    %84 = arith.mulf %82, %83 : vector<128x1xf32>
    %cst_47 = arith.constant 9.99999974E-6 : f32
    %85 = vector.broadcast %cst_47 : f32 to vector<128x1xf32>
    %86 = arith.addf %84, %85 : vector<128x1xf32>
    %87 = math.rsqrt %86 : vector<128x1xf32>
    %88 = vector.broadcast %87 : vector<128x1xf32> to vector<128x128xf32>
    %89 = arith.mulf %77, %88 : vector<128x128xf32>
    %c0_48 = arith.constant 0 : index
    %c0_49 = arith.constant 0 : index
    %90 = vector.load %arg8[%c0_48, %c0_49] : memref<1x128xf32, #tpu.memory_space<vmem>>, vector<1x128xf32>
    %91 = vector.broadcast %90 : vector<1x128xf32> to vector<128x128xf32>
    %92 = arith.mulf %89, %91 : vector<128x128xf32>
    %c0_50 = arith.constant 0 : index
    %c0_51 = arith.constant 0 : index
    %93 = vector.load %arg9[%c0_50, %c0_51] : memref<1x128xf32, #tpu.memory_space<vmem>>, vector<1x128xf32>
    %94 = vector.broadcast %93 : vector<1x128xf32> to vector<128x128xf32>
    %95 = arith.addf %92, %94 : vector<128x128xf32>
    %96 = arith.truncf %95 : vector<128x128xf32> to vector<128x128xbf16>
    %c0_52 = arith.constant 0 : index
    %c0_53 = arith.constant 0 : index
    %97 = vector.load %arg10[%c0_52, %c0_53] : memref<128x128xbf16, #tpu.memory_space<vmem>>, vector<128x128xbf16>
    tpu.vector_store %arg10[%c0_52, %c0_53], %96 {strides = array<i32>} : memref<128x128xbf16, #tpu.memory_space<vmem>>, vector<128x128xbf16>,
    return
  }
}

</mosaic_0001>

<llo_original>
// kernel: tpu_custom_call.1
$region0: #{tpu_custom_call.1}
  #allocation0 [shape = 'u32[]', space=smem, size = 0x4, offset = 0x4, fixed_abs, tag = 'smem constant byte address 0x4 - core index']
  #allocation1 [shape = 'u32[72,128]{1,0:T(1,128)}', space=vmem, size = 0x9000, scoped, tag = 'internal scratch']
  %s0 = inlined_call_operand.hbm [shape: bf16[128,128], index: 0, kind: input, shape index: {}]
  %s1 = inlined_call_operand.hbm [shape: bf16[128,128], index: 1, kind: input, shape index: {}]
  %s2 = inlined_call_operand.hbm [shape: bf16[3,128,128], index: 2, kind: input, shape index: {}]
  %s3 = inlined_call_operand.vmem [shape: f32[1,128], index: 3, kind: input, shape index: {}]
  %s4 = inlined_call_operand.vmem [shape: f32[1,128], index: 4, kind: input, shape index: {}]
  %s5 = inlined_call_operand.vmem [shape: f32[1,128], index: 5, kind: input, shape index: {}]
  %s6 = inlined_call_operand.hbm [shape: bf16[3,128,128], index: 6, kind: input, shape index: {}]
  %s7 = inlined_call_operand.vmem [shape: f32[1,128], index: 7, kind: input, shape index: {}]
  %s8 = inlined_call_operand.vmem [shape: f32[1,128], index: 8, kind: input, shape index: {}]
  %s9 = inlined_call_operand.vmem [shape: f32[1,128], index: 9, kind: input, shape index: {}]
  %s10 = inlined_call_operand.hbm [shape: bf16[128,128], index: 10, kind: output, shape index: {}]
  %s11 = sld [smem:[#allocation0]]
  $region66: #{tpu_custom_call.1} parent=0
    _
  %s13 = ssub.s32 1, %s11
  %s14 = scalar_select 0, %s13, %s11
  $region1: #{tpu_custom_call.1} parent=0
    #allocation2 [shape = 'u8[32768]{0}', space=vmem, size = 0x8000, scoped, tag = 'input window, operand 0, single buffered']
    #allocation3 [shape = 's32[1]{0}', space=sflag, size = 0x4, scoped, tag = 'scoped memory for tpu_custom_call.1']
    #allocation4 [shape = 's32[1]{0}', space=sflag, size = 0x4, scoped, tag = 'scoped memory for tpu_custom_call.1']
    #allocation5 [shape = 'u8[32768]{0}', space=vmem, size = 0x8000, scoped, tag = 'input window, operand 1, single buffered']
    #allocation6 [shape = 's32[1]{0}', space=sflag, size = 0x4, scoped, tag = 'scoped memory for tpu_custom_call.1']
    #allocation7 [shape = 'u8[98304]{0}', space=vmem, size = 0x18000, scoped, tag = 'input window, operand 2, single buffered']
    #allocation8 [shape = 'u8[98304]{0}', space=vmem, size = 0x18000, scoped, tag = 'input window, operand 6, single buffered']
    #allocation9 [shape = 's32[1]{0}', space=sflag, size = 0x4, scoped, tag = 'scoped memory for tpu_custom_call.1']
    #allocation10 [shape = 'u8[32768]{0}', space=vmem, size = 0x8000, scoped, tag = 'output window, operand 0, single buffered']
    %15 = vsyncpa [#allocation3], 0
    %16 = vsyncpa [#allocation6], 0
    %17 = vsyncpa [#allocation9], 0
    %18 = vsyncpa [#allocation4], 0
    // Predicated region
    $region2: #{tpu_custom_call.1} parent=1 // pred_check
      _
    $region3: #{tpu_custom_call.1} parent=1 // pred_check_branch
      %20 = sbr.rel (0) target = $region5
    $region4: #{tpu_custom_call.1} parent=1 // pred_region
      %22 = vsyncadd [#allocation3], 0
      %s23 = sshll.u32 %s0, 4
      %s24 = int_to_ptr.hbm [resolvable:$true] %s23
      %s25 = sshll.u32 [#allocation2], 4
      %s26 = int_to_ptr.vmem [resolvable:$true] %s25
      %31 = dma.hbm_to_vmem [thread:$0]  %s24, 1024, %s26, [#allocation3], 64, 64, 4
    $region5: #{tpu_custom_call.1} parent=1 // pred_fallthru
      _
    // Predicated region
    $region6: #{tpu_custom_call.1} parent=1 // pred_check
      _
    $region7: #{tpu_custom_call.1} parent=1 // pred_check_branch
      %33 = sbr.rel (0) target = $region9
    $region8: #{tpu_custom_call.1} parent=1 // pred_region
      %35 = vsyncadd [#allocation6], 0
      %s36 = sshll.u32 %s1, 4
      %s37 = int_to_ptr.hbm [resolvable:$true] %s36
      %s38 = sshll.u32 [#allocation5], 4
      %s39 = int_to_ptr.vmem [resolvable:$true] %s38
      %44 = dma.hbm_to_vmem [thread:$0]  %s37, 1024, %s39, [#allocation6], 64, 64, 4
    $region9: #{tpu_custom_call.1} parent=1 // pred_fallthru
      _
    // Predicated region
    $region10: #{tpu_custom_call.1} parent=1 // pred_check
      _
    $region11: #{tpu_custom_call.1} parent=1 // pred_check_branch
      %46 = sbr.rel (0) target = $region13
    $region12: #{tpu_custom_call.1} parent=1 // pred_region
      %48 = vsyncadd [#allocation6], 0
      %s49 = sshll.u32 %s2, 4
      %s50 = int_to_ptr.hbm [resolvable:$true] %s49
      %s51 = sshll.u32 [#allocation7], 4
      %s52 = int_to_ptr.vmem [resolvable:$true] %s51
      %57 = dma.hbm_to_vmem [thread:$0]  %s50, 3072, %s52, [#allocation6], 64, 64, 4
    $region13: #{tpu_custom_call.1} parent=1 // pred_fallthru
      _
    // Predicated region
    $region14: #{tpu_custom_call.1} parent=1 // pred_check
      _
    $region15: #{tpu_custom_call.1} parent=1 // pred_check_branch
      %59 = sbr.rel (0) target = $region17
    $region16: #{tpu_custom_call.1} parent=1 // pred_region
      _
    $region17: #{tpu_custom_call.1} parent=1 // pred_fallthru
      _
    // Predicated region
    $region18: #{tpu_custom_call.1} parent=1 // pred_check
      _
    $region19: #{tpu_custom_call.1} parent=1 // pred_check_branch
      %61 = sbr.rel (0) target = $region21
    $region20: #{tpu_custom_call.1} parent=1 // pred_region
      _
    $region21: #{tpu_custom_call.1} parent=1 // pred_fallthru
      _
    // Predicated region
    $region22: #{tpu_custom_call.1} parent=1 // pred_check
      _
    $region23: #{tpu_custom_call.1} parent=1 // pred_check_branch
      %63 = sbr.rel (0) target = $region25
    $region24: #{tpu_custom_call.1} parent=1 // pred_region
      _
    $region25: #{tpu_custom_call.1} parent=1 // pred_fallthru
      _
    // Predicated region
    $region26: #{tpu_custom_call.1} parent=1 // pred_check
      _
    $region27: #{tpu_custom_call.1} parent=1 // pred_check_branch
      %65 = sbr.rel (0) target = $region29
    $region28: #{tpu_custom_call.1} parent=1 // pred_region
      %67 = vsyncadd [#allocation9], 0
      %s68 = sshll.u32 %s6, 4
      %s69 = int_to_ptr.hbm [resolvable:$true] %s68
      %s70 = sshll.u32 [#allocation8], 4
      %s71 = int_to_ptr.vmem [resolvable:$true] %s70
      %76 = dma.hbm_to_vmem [thread:$0]  %s69, 3072, %s71, [#allocation9], 64, 64, 4
    $region29: #{tpu_custom_call.1} parent=1 // pred_fallthru
      _
    // Predicated region
    $region30: #{tpu_custom_call.1} parent=1 // pred_check
      _
    $region31: #{tpu_custom_call.1} parent=1 // pred_check_branch
      %78 = sbr.rel (0) target = $region33
    $region32: #{tpu_custom_call.1} parent=1 // pred_region
      _
    $region33: #{tpu_custom_call.1} parent=1 // pred_fallthru
      _
    // Predicated region
    $region34: #{tpu_custom_call.1} parent=1 // pred_check
      _
    $region35: #{tpu_custom_call.1} parent=1 // pred_check_branch
      %80 = sbr.rel (0) target = $region37
    $region36: #{tpu_custom_call.1} parent=1 // pred_region
      _
    $region37: #{tpu_custom_call.1} parent=1 // pred_fallthru
      _
    // Predicated region
    $region38: #{tpu_custom_call.1} parent=1 // pred_check
      _
    $region39: #{tpu_custom_call.1} parent=1 // pred_check_branch
      %82 = sbr.rel (0) target = $region41
    $region40: #{tpu_custom_call.1} parent=1 // pred_region
      _
    $region41: #{tpu_custom_call.1} parent=1 // pred_fallthru
      _
    // Predicated region
    $region42: #{tpu_custom_call.1} parent=1 // pred_check
      _
    $region43: #{tpu_custom_call.1} parent=1 // pred_check_branch
      %84 = sbr.rel (0) target = $region45
    $region44: #{tpu_custom_call.1} parent=1 // pred_region
      %86 = dma.done [#allocation3], 1024
    $region45: #{tpu_custom_call.1} parent=1 // pred_fallthru
      _
    // Predicated region
    $region46: #{tpu_custom_call.1} parent=1 // pred_check
      _
    $region47: #{tpu_custom_call.1} parent=1 // pred_check_branch
      %88 = sbr.rel (0) target = $region49
    $region48: #{tpu_custom_call.1} parent=1 // pred_region
      %90 = dma.done [#allocation6], 1024
    $region49: #{tpu_custom_call.1} parent=1 // pred_fallthru
      _
    // Predicated region
    $region50: #{tpu_custom_call.1} parent=1 // pred_check
      _
    $region51: #{tpu_custom_call.1} parent=1 // pred_check_branch
      %92 = sbr.rel (0) target = $region53
    $region52: #{tpu_custom_call.1} parent=1 // pred_region
      %94 = dma.done [#allocation6], 3072
    $region53: #{tpu_custom_call.1} parent=1 // pred_fallthru
      _
    // Predicated region
    $region54: #{tpu_custom_call.1} parent=1 // pred_check
      _
    $region55: #{tpu_custom_call.1} parent=1 // pred_check_branch
      %96 = sbr.rel (0) target = $region57
    $region56: #{tpu_custom_call.1} parent=1 // pred_region
      %98 = dma.done [#allocation9], 3072
    $region57: #{tpu_custom_call.1} parent=1 // pred_fallthru
      _
    %v99 = vld [vmem:[#allocation2] sm:$0xf]
    %v100 = vld [vmem:[#allocation2 + $0x4] sm:$0xf]
    %v101 = vld [vmem:[#allocation2 + $0x8] sm:$0xf]
    %v102 = vld [vmem:[#allocation2 + $0xc] sm:$0xf]
    %v103 = vld [vmem:[#allocation2 + $0x10] sm:$0xf]
    %v104 = vld [vmem:[#allocation2 + $0x14] sm:$0xf]
    %v105 = vld [vmem:[#allocation2 + $0x18] sm:$0xf]
    %v106 = vld [vmem:[#allocation2 + $0x1c] sm:$0xf]
    %v107 = vld [vmem:[#allocation2 + $0x20] sm:$0xf]
    %v108 = vld [vmem:[#allocation2 + $0x24] sm:$0xf]
    %v109 = vld [vmem:[#allocation2 + $0x28] sm:$0xf]
    %v110 = vld [vmem:[#allocation2 + $0x2c] sm:$0xf]
    %v111 = vld [vmem:[#allocation2 + $0x30] sm:$0xf]
    %v112 = vld [vmem:[#allocation2 + $0x34] sm:$0xf]
    %v113 = vld [vmem:[#allocation2 + $0x38] sm:$0xf]
    %v114 = vld [vmem:[#allocation2 + $0x3c] sm:$0xf]
    %v115 = vld [vmem:[#allocation5] sm:$0xf]
    %v116 = vld [vmem:[#allocation5 + $0x4] sm:$0xf]
    %v117 = vld [vmem:[#allocation5 + $0x8] sm:$0xf]
    %v118 = vld [vmem:[#allocation5 + $0xc] sm:$0xf]
    %v119 = vld [vmem:[#allocation5 + $0x10] sm:$0xf]
    %v120 = vld [vmem:[#allocation5 + $0x14] sm:$0xf]
    %v121 = vld [vmem:[#allocation5 + $0x18] sm:$0xf]
    %v122 = vld [vmem:[#allocation5 + $0x1c] sm:$0xf]
    %v123 = vld [vmem:[#allocation5 + $0x20] sm:$0xf]
    %v124 = vld [vmem:[#allocation5 + $0x24] sm:$0xf]
    %v125 = vld [vmem:[#allocation5 + $0x28] sm:$0xf]
    %v126 = vld [vmem:[#allocation5 + $0x2c] sm:$0xf]
    %v127 = vld [vmem:[#allocation5 + $0x30] sm:$0xf]
    %v128 = vld [vmem:[#allocation5 + $0x34] sm:$0xf]
    %v129 = vld [vmem:[#allocation5 + $0x38] sm:$0xf]
    %v130 = vld [vmem:[#allocation5 + $0x3c] sm:$0xf]
    %v131 = vlaneseq
    %v132 = vand.u32 %v131, 127
    %vm133 = vcmp.lt.s32.totalorder %v132, 32
    %v134 = vsel %vm133, 1, 0
    %v135 = vcvt.s32.f32 %v134
    %v136 = vld [vmem:[#allocation7] sm:$0xf]
    %v137 = vld [vmem:[#allocation7 + $0x4] sm:$0xf]
    %v138 = vld [vmem:[#allocation7 + $0x8] sm:$0xf]
    %v139 = vld [vmem:[#allocation7 + $0xc] sm:$0xf]
    %v140 = vld [vmem:[#allocation7 + $0x10] sm:$0xf]
    %v141 = vld [vmem:[#allocation7 + $0x14] sm:$0xf]
    %v142 = vld [vmem:[#allocation7 + $0x18] sm:$0xf]
    %v143 = vld [vmem:[#allocation7 + $0x1c] sm:$0xf]
    %v144 = vld [vmem:[#allocation7 + $0x20] sm:$0xf]
    %v145 = vld [vmem:[#allocation7 + $0x24] sm:$0xf]
    %v146 = vld [vmem:[#allocation7 + $0x28] sm:$0xf]
    %v147 = vld [vmem:[#allocation7 + $0x2c] sm:$0xf]
    %v148 = vld [vmem:[#allocation7 + $0x30] sm:$0xf]
    %v149 = vld [vmem:[#allocation7 + $0x34] sm:$0xf]
    %v150 = vld [vmem:[#allocation7 + $0x38] sm:$0xf]
    %v151 = vld [vmem:[#allocation7 + $0x3c] sm:$0xf]
    %v168 = vunpack.c.l.b16 %v99
    %v169 = vunpack.c.l.b16 %v100
    %v170 = vunpack.c.l.b16 %v101
    %v171 = vunpack.c.l.b16 %v102
    %v172 = vunpack.c.l.b16 %v103
    %v173 = vunpack.c.l.b16 %v104
    %v174 = vunpack.c.l.b16 %v105
    %v175 = vunpack.c.l.b16 %v106
    %v176 = vunpack.c.l.b16 %v107
    %v177 = vunpack.c.l.b16 %v108
    %v178 = vunpack.c.l.b16 %v109
    %v179 = vunpack.c.l.b16 %v110
    %v180 = vunpack.c.l.b16 %v111
    %v181 = vunpack.c.l.b16 %v112
    %v182 = vunpack.c.l.b16 %v113
    %v183 = vunpack.c.l.b16 %v114
    %v184 = vpack.c.b16 %v169, %v168
    %v185 = vpack.c.b16 %v171, %v170
    %v186 = vpack.c.b16 %v173, %v172
    %v187 = vpack.c.b16 %v175, %v174
    %v188 = vpack.c.b16 %v177, %v176
    %v189 = vpack.c.b16 %v179, %v178
    %v190 = vpack.c.b16 %v181, %v180
    %v191 = vpack.c.b16 %v183, %v182
    %v216 = vunpack.c.l.b16 %v115
    %v217 = vunpack.c.l.b16 %v116
    %v218 = vunpack.c.l.b16 %v117
    %v219 = vunpack.c.l.b16 %v118
    %v220 = vunpack.c.l.b16 %v119
    %v221 = vunpack.c.l.b16 %v120
    %v222 = vunpack.c.l.b16 %v121
    %v223 = vunpack.c.l.b16 %v122
    %v224 = vunpack.c.l.b16 %v123
    %v225 = vunpack.c.l.b16 %v124
    %v226 = vunpack.c.l.b16 %v125
    %v227 = vunpack.c.l.b16 %v126
    %v228 = vunpack.c.l.b16 %v127
    %v229 = vunpack.c.l.b16 %v128
    %v230 = vunpack.c.l.b16 %v129
    %v231 = vunpack.c.l.b16 %v130
    %v232 = vpack.c.b16 %v217, %v216
    %v233 = vpack.c.b16 %v219, %v218
    %v234 = vpack.c.b16 %v221, %v220
    %v235 = vpack.c.b16 %v223, %v222
    %v236 = vpack.c.b16 %v225, %v224
    %v237 = vpack.c.b16 %v227, %v226
    %v238 = vpack.c.b16 %v229, %v228
    %v239 = vpack.c.b16 %v231, %v230
    %248 = vmatpush.bf16.msra.mxu0 %v239
    %249 = vmatpush.bf16.msra.mxu0 %v238
    %250 = vmatpush.bf16.msra.mxu0 %v237
    %251 = vmatpush.bf16.msra.mxu0 %v236
    %252 = vmatpush.bf16.msra.mxu0 %v235
    %253 = vmatpush.bf16.msra.mxu0 %v234
    %254 = vmatpush.bf16.msra.mxu0 %v233
    %255 = vmatpush.bf16.msra.mxu0 %v232
    %256 = vmatmul.bf16.gmra.mxu0 %v184
    %v257 = vpop.f32.mrf.mxu0
    %v258 = vadd.f32 0.0, %v257
    %v259 = vpop.f32.mrf.mxu0
    %v260 = vadd.f32 0.0, %v259
    %261 = vmatmul.bf16.gmra.mxu0 %v185
    %v262 = vpop.f32.mrf.mxu0
    %v263 = vadd.f32 0.0, %v262
    %v264 = vpop.f32.mrf.mxu0
    %v265 = vadd.f32 0.0, %v264
    %266 = vmatmul.bf16.gmra.mxu0 %v186
    %v267 = vpop.f32.mrf.mxu0
    %v268 = vadd.f32 0.0, %v267
    %v269 = vpop.f32.mrf.mxu0
    %v270 = vadd.f32 0.0, %v269
    %271 = vmatmul.bf16.gmra.mxu0 %v187
    %v272 = vpop.f32.mrf.mxu0
    %v273 = vadd.f32 0.0, %v272
    %v274 = vpop.f32.mrf.mxu0
    %v275 = vadd.f32 0.0, %v274
    %276 = vmatmul.bf16.gmra.mxu0 %v188
    %v277 = vpop.f32.mrf.mxu0
    %v278 = vadd.f32 0.0, %v277
    %v279 = vpop.f32.mrf.mxu0
    %v280 = vadd.f32 0.0, %v279
    %281 = vmatmul.bf16.gmra.mxu0 %v189
    %v282 = vpop.f32.mrf.mxu0
    %v283 = vadd.f32 0.0, %v282
    %v284 = vpop.f32.mrf.mxu0
    %v285 = vadd.f32 0.0, %v284
    %286 = vmatmul.bf16.gmra.mxu0 %v190
    %v287 = vpop.f32.mrf.mxu0
    %v288 = vadd.f32 0.0, %v287
    %v289 = vpop.f32.mrf.mxu0
    %v290 = vadd.f32 0.0, %v289
    %291 = vmatmul.bf16.gmra.mxu0 %v191
    %v292 = vpop.f32.mrf.mxu0
    %v293 = vadd.f32 0.0, %v292
    %v294 = vpop.f32.mrf.mxu0
    %v295 = vadd.f32 0.0, %v294
    %296 = vdwg.mxu0
    %v297 = vpack.c.bf16 %v260, %v258
    %v298 = vpack.c.bf16 %v265, %v263
    %v299 = vpack.c.bf16 %v270, %v268
    %v300 = vpack.c.bf16 %v275, %v273
    %v301 = vpack.c.bf16 %v280, %v278
    %v302 = vpack.c.bf16 %v285, %v283
    %v303 = vpack.c.bf16 %v290, %v288
    %v304 = vpack.c.bf16 %v295, %v293
    %s305 = scalar_lea.vmem [#allocation7], 64
    %v306 = vld [vmem:[%s305] sm:$0xf]
    %v307 = vld [vmem:[%s305 + $0x4] sm:$0xf]
    %v308 = vld [vmem:[%s305 + $0x8] sm:$0xf]
    %v309 = vld [vmem:[%s305 + $0xc] sm:$0xf]
    %v310 = vld [vmem:[%s305 + $0x10] sm:$0xf]
    %v311 = vld [vmem:[%s305 + $0x14] sm:$0xf]
    %v312 = vld [vmem:[%s305 + $0x18] sm:$0xf]
    %v313 = vld [vmem:[%s305 + $0x1c] sm:$0xf]
    %v314 = vld [vmem:[%s305 + $0x20] sm:$0xf]
    %v315 = vld [vmem:[%s305 + $0x24] sm:$0xf]
    %v316 = vld [vmem:[%s305 + $0x28] sm:$0xf]
    %v317 = vld [vmem:[%s305 + $0x2c] sm:$0xf]
    %v318 = vld [vmem:[%s305 + $0x30] sm:$0xf]
    %v319 = vld [vmem:[%s305 + $0x34] sm:$0xf]
    %v320 = vld [vmem:[%s305 + $0x38] sm:$0xf]
    %v321 = vld [vmem:[%s305 + $0x3c] sm:$0xf]
    %v338 = vunpack.c.l.b16 %v306
    %v339 = vunpack.c.l.b16 %v307
    %v340 = vunpack.c.l.b16 %v308
    %v341 = vunpack.c.l.b16 %v309
    %v342 = vunpack.c.l.b16 %v310
    %v343 = vunpack.c.l.b16 %v311
    %v344 = vunpack.c.l.b16 %v312
    %v345 = vunpack.c.l.b16 %v313
    %v346 = vunpack.c.l.b16 %v314
    %v347 = vunpack.c.l.b16 %v315
    %v348 = vunpack.c.l.b16 %v316
    %v349 = vunpack.c.l.b16 %v317
    %v350 = vunpack.c.l.b16 %v318
    %v351 = vunpack.c.l.b16 %v319
    %v352 = vunpack.c.l.b16 %v320
    %v353 = vunpack.c.l.b16 %v321
    %v354 = vpack.c.b16 %v339, %v338
    %v355 = vpack.c.b16 %v341, %v340
    %v356 = vpack.c.b16 %v343, %v342
    %v357 = vpack.c.b16 %v345, %v344
    %v358 = vpack.c.b16 %v347, %v346
    %v359 = vpack.c.b16 %v349, %v348
    %v360 = vpack.c.b16 %v351, %v350
    %v361 = vpack.c.b16 %v353, %v352
    %370 = vmatpush.bf16.msra.mxu0 %v361
    %371 = vmatpush.bf16.msra.mxu0 %v360
    %372 = vmatpush.bf16.msra.mxu0 %v359
    %373 = vmatpush.bf16.msra.mxu0 %v358
    %374 = vmatpush.bf16.msra.mxu0 %v357
    %375 = vmatpush.bf16.msra.mxu0 %v356
    %376 = vmatpush.bf16.msra.mxu0 %v355
    %377 = vmatpush.bf16.msra.mxu0 %v354
    %378 = vmatmul.bf16.gmra.mxu0 %v297
    %v379 = vpop.f32.mrf.mxu0
    %v380 = vadd.f32 0.0, %v379
    %v381 = vpop.f32.mrf.mxu0
    %v382 = vadd.f32 0.0, %v381
    %383 = vmatmul.bf16.gmra.mxu0 %v298
    %v384 = vpop.f32.mrf.mxu0
    %v385 = vadd.f32 0.0, %v384
    %v386 = vpop.f32.mrf.mxu0
    %v387 = vadd.f32 0.0, %v386
    %388 = vmatmul.bf16.gmra.mxu0 %v299
    %v389 = vpop.f32.mrf.mxu0
    %v390 = vadd.f32 0.0, %v389
    %v391 = vpop.f32.mrf.mxu0
    %v392 = vadd.f32 0.0, %v391
    %393 = vmatmul.bf16.gmra.mxu0 %v300
    %v394 = vpop.f32.mrf.mxu0
    %v395 = vadd.f32 0.0, %v394
    %v396 = vpop.f32.mrf.mxu0
    %v397 = vadd.f32 0.0, %v396
    %398 = vmatmul.bf16.gmra.mxu0 %v301
    %v399 = vpop.f32.mrf.mxu0
    %v400 = vadd.f32 0.0, %v399
    %v401 = vpop.f32.mrf.mxu0
    %v402 = vadd.f32 0.0, %v401
    %403 = vmatmul.bf16.gmra.mxu0 %v302
    %v404 = vpop.f32.mrf.mxu0
    %v405 = vadd.f32 0.0, %v404
    %v406 = vpop.f32.mrf.mxu0
    %v407 = vadd.f32 0.0, %v406
    %408 = vmatmul.bf16.gmra.mxu0 %v303
    %v409 = vpop.f32.mrf.mxu0
    %v410 = vadd.f32 0.0, %v409
    %v411 = vpop.f32.mrf.mxu0
    %v412 = vadd.f32 0.0, %v411
    %413 = vmatmul.bf16.gmra.mxu0 %v304
    %v414 = vpop.f32.mrf.mxu0
    %v415 = vadd.f32 0.0, %v414
    %v416 = vpop.f32.mrf.mxu0
    %v417 = vadd.f32 0.0, %v416
    %418 = vdwg.mxu0
    %v435 = vunpack.c.l.b16 %v136
    %v436 = vunpack.c.l.b16 %v137
    %v437 = vunpack.c.l.b16 %v138
    %v438 = vunpack.c.l.b16 %v139
    %v439 = vunpack.c.l.b16 %v140
    %v440 = vunpack.c.l.b16 %v141
    %v441 = vunpack.c.l.b16 %v142
    %v442 = vunpack.c.l.b16 %v143
    %v443 = vunpack.c.l.b16 %v144
    %v444 = vunpack.c.l.b16 %v145
    %v445 = vunpack.c.l.b16 %v146
    %v446 = vunpack.c.l.b16 %v147
    %v447 = vunpack.c.l.b16 %v148
    %v448 = vunpack.c.l.b16 %v149
    %v449 = vunpack.c.l.b16 %v150
    %v450 = vunpack.c.l.b16 %v151
    %v451 = vpack.c.b16 %v436, %v435
    %v452 = vpack.c.b16 %v438, %v437
    %v453 = vpack.c.b16 %v440, %v439
    %v454 = vpack.c.b16 %v442, %v441
    %v455 = vpack.c.b16 %v444, %v443
    %v456 = vpack.c.b16 %v446, %v445
    %v457 = vpack.c.b16 %v448, %v447
    %v458 = vpack.c.b16 %v450, %v449
    %467 = vmatpush.bf16.msra.mxu0 %v458
    %468 = vmatpush.bf16.msra.mxu0 %v457
    %469 = vmatpush.bf16.msra.mxu0 %v456
    %470 = vmatpush.bf16.msra.mxu0 %v455
    %471 = vmatpush.bf16.msra.mxu0 %v454
    %472 = vmatpush.bf16.msra.mxu0 %v453
    %473 = vmatpush.bf16.msra.mxu0 %v452
    %474 = vmatpush.bf16.msra.mxu0 %v451
    %475 = vmatmul.bf16.gmra.mxu0 %v232
    %v476 = vpop.f32.mrf.mxu0
    %v477 = vadd.f32 %v380, %v476
    %v478 = vpop.f32.mrf.mxu0
    %v479 = vadd.f32 %v382, %v478
    %480 = vmatmul.bf16.gmra.mxu0 %v233
    %v481 = vpop.f32.mrf.mxu0
    %v482 = vadd.f32 %v385, %v481
    %v483 = vpop.f32.mrf.mxu0
    %v484 = vadd.f32 %v387, %v483
    %485 = vmatmul.bf16.gmra.mxu0 %v234
    %v486 = vpop.f32.mrf.mxu0
    %v487 = vadd.f32 %v390, %v486
    %v488 = vpop.f32.mrf.mxu0
    %v489 = vadd.f32 %v392, %v488
    %490 = vmatmul.bf16.gmra.mxu0 %v235
    %v491 = vpop.f32.mrf.mxu0
    %v492 = vadd.f32 %v395, %v491
    %v493 = vpop.f32.mrf.mxu0
    %v494 = vadd.f32 %v397, %v493
    %495 = vmatmul.bf16.gmra.mxu0 %v236
    %v496 = vpop.f32.mrf.mxu0
    %v497 = vadd.f32 %v400, %v496
    %v498 = vpop.f32.mrf.mxu0
    %v499 = vadd.f32 %v402, %v498
    %500 = vmatmul.bf16.gmra.mxu0 %v237
    %v501 = vpop.f32.mrf.mxu0
    %v502 = vadd.f32 %v405, %v501
    %v503 = vpop.f32.mrf.mxu0
    %v504 = vadd.f32 %v407, %v503
    %505 = vmatmul.bf16.gmra.mxu0 %v238
    %v506 = vpop.f32.mrf.mxu0
    %v507 = vadd.f32 %v410, %v506
    %v508 = vpop.f32.mrf.mxu0
    %v509 = vadd.f32 %v412, %v508
    %510 = vmatmul.bf16.gmra.mxu0 %v239
    %v511 = vpop.f32.mrf.mxu0
    %v512 = vadd.f32 %v415, %v511
    %v513 = vpop.f32.mrf.mxu0
    %v514 = vadd.f32 %v417, %v513
    %515 = vdwg.mxu0
    %516 = vmatpush.bf16.msra.mxu0 %v304
    %517 = vmatpush.bf16.msra.mxu0 %v303
    %518 = vmatpush.bf16.msra.mxu0 %v302
    %519 = vmatpush.bf16.msra.mxu0 %v301
    %520 = vmatpush.bf16.msra.mxu0 %v300
    %521 = vmatpush.bf16.msra.mxu0 %v299
    %522 = vmatpush.bf16.msra.mxu0 %v298
    %523 = vmatpush.bf16.msra.mxu0 %v297
    %524 = vmatmul.bf16.gmra.mxu0 %v184
    %v525 = vpop.f32.mrf.mxu0
    %v526 = vadd.f32 0.0, %v525
    %v527 = vpop.f32.mrf.mxu0
    %v528 = vadd.f32 0.0, %v527
    %529 = vmatmul.bf16.gmra.mxu0 %v185
    %v530 = vpop.f32.mrf.mxu0
    %v531 = vadd.f32 0.0, %v530
    %v532 = vpop.f32.mrf.mxu0
    %v533 = vadd.f32 0.0, %v532
    %534 = vmatmul.bf16.gmra.mxu0 %v186
    %v535 = vpop.f32.mrf.mxu0
    %v536 = vadd.f32 0.0, %v535
    %v537 = vpop.f32.mrf.mxu0
    %v538 = vadd.f32 0.0, %v537
    %539 = vmatmul.bf16.gmra.mxu0 %v187
    %v540 = vpop.f32.mrf.mxu0
    %v541 = vadd.f32 0.0, %v540
    %v542 = vpop.f32.mrf.mxu0
    %v543 = vadd.f32 0.0, %v542
    %544 = vmatmul.bf16.gmra.mxu0 %v188
    %v545 = vpop.f32.mrf.mxu0
    %v546 = vadd.f32 0.0, %v545
    %v547 = vpop.f32.mrf.mxu0
    %v548 = vadd.f32 0.0, %v547
    %549 = vmatmul.bf16.gmra.mxu0 %v189
    %v550 = vpop.f32.mrf.mxu0
    %v551 = vadd.f32 0.0, %v550
    %v552 = vpop.f32.mrf.mxu0
    %v553 = vadd.f32 0.0, %v552
    %554 = vmatmul.bf16.gmra.mxu0 %v190
    %v555 = vpop.f32.mrf.mxu0
    %v556 = vadd.f32 0.0, %v555
    %v557 = vpop.f32.mrf.mxu0
    %v558 = vadd.f32 0.0, %v557
    %559 = vmatmul.bf16.gmra.mxu0 %v191
    %v560 = vpop.f32.mrf.mxu0
    %v561 = vadd.f32 0.0, %v560
    %v562 = vpop.f32.mrf.mxu0
    %v563 = vadd.f32 0.0, %v562
    %564 = vdwg.mxu0
    %v565 = vpack.c.bf16 %v528, %v526
    %v566 = vpack.c.bf16 %v533, %v531
    %v567 = vpack.c.bf16 %v538, %v536
    %v568 = vpack.c.bf16 %v543, %v541
    %v569 = vpack.c.bf16 %v548, %v546
    %v570 = vpack.c.bf16 %v553, %v551
    %v571 = vpack.c.bf16 %v558, %v556
    %v572 = vpack.c.bf16 %v563, %v561
    %s573 = scalar_lea.vmem [#allocation7], 128
    %v574 = vld [vmem:[%s573] sm:$0xf]
    %v575 = vld [vmem:[%s573 + $0x4] sm:$0xf]
    %v576 = vld [vmem:[%s573 + $0x8] sm:$0xf]
    %v577 = vld [vmem:[%s573 + $0xc] sm:$0xf]
    %v578 = vld [vmem:[%s573 + $0x10] sm:$0xf]
    %v579 = vld [vmem:[%s573 + $0x14] sm:$0xf]
    %v580 = vld [vmem:[%s573 + $0x18] sm:$0xf]
    %v581 = vld [vmem:[%s573 + $0x1c] sm:$0xf]
    %v582 = vld [vmem:[%s573 + $0x20] sm:$0xf]
    %v583 = vld [vmem:[%s573 + $0x24] sm:$0xf]
    %v584 = vld [vmem:[%s573 + $0x28] sm:$0xf]
    %v585 = vld [vmem:[%s573 + $0x2c] sm:$0xf]
    %v586 = vld [vmem:[%s573 + $0x30] sm:$0xf]
    %v587 = vld [vmem:[%s573 + $0x34] sm:$0xf]
    %v588 = vld [vmem:[%s573 + $0x38] sm:$0xf]
    %v589 = vld [vmem:[%s573 + $0x3c] sm:$0xf]
    %v606 = vunpack.c.l.b16 %v574
    %v607 = vunpack.c.l.b16 %v575
    %v608 = vunpack.c.l.b16 %v576
    %v609 = vunpack.c.l.b16 %v577
    %v610 = vunpack.c.l.b16 %v578
    %v611 = vunpack.c.l.b16 %v579
    %v612 = vunpack.c.l.b16 %v580
    %v613 = vunpack.c.l.b16 %v581
    %v614 = vunpack.c.l.b16 %v582
    %v615 = vunpack.c.l.b16 %v583
    %v616 = vunpack.c.l.b16 %v584
    %v617 = vunpack.c.l.b16 %v585
    %v618 = vunpack.c.l.b16 %v586
    %v619 = vunpack.c.l.b16 %v587
    %v620 = vunpack.c.l.b16 %v588
    %v621 = vunpack.c.l.b16 %v589
    %v622 = vpack.c.b16 %v607, %v606
    %v623 = vpack.c.b16 %v609, %v608
    %v624 = vpack.c.b16 %v611, %v610
    %v625 = vpack.c.b16 %v613, %v612
    %v626 = vpack.c.b16 %v615, %v614
    %v627 = vpack.c.b16 %v617, %v616
    %v628 = vpack.c.b16 %v619, %v618
    %v629 = vpack.c.b16 %v621, %v620
    %638 = vmatpush.bf16.msra.mxu0 %v629
    %639 = vmatpush.bf16.msra.mxu0 %v628
    %640 = vmatpush.bf16.msra.mxu0 %v627
    %641 = vmatpush.bf16.msra.mxu0 %v626
    %642 = vmatpush.bf16.msra.mxu0 %v625
    %643 = vmatpush.bf16.msra.mxu0 %v624
    %644 = vmatpush.bf16.msra.mxu0 %v623
    %645 = vmatpush.bf16.msra.mxu0 %v622
    %646 = vmatmul.bf16.gmra.mxu0 %v565
    %v647 = vpop.f32.mrf.mxu0
    %v648 = vadd.f32 0.0, %v647
    %v649 = vpop.f32.mrf.mxu0
    %v650 = vadd.f32 0.0, %v649
    %651 = vmatmul.bf16.gmra.mxu0 %v566
    %v652 = vpop.f32.mrf.mxu0
    %v653 = vadd.f32 0.0, %v652
    %v654 = vpop.f32.mrf.mxu0
    %v655 = vadd.f32 0.0, %v654
    %656 = vmatmul.bf16.gmra.mxu0 %v567
    %v657 = vpop.f32.mrf.mxu0
    %v658 = vadd.f32 0.0, %v657
    %v659 = vpop.f32.mrf.mxu0
    %v660 = vadd.f32 0.0, %v659
    %661 = vmatmul.bf16.gmra.mxu0 %v568
    %v662 = vpop.f32.mrf.mxu0
    %v663 = vadd.f32 0.0, %v662
    %v664 = vpop.f32.mrf.mxu0
    %v665 = vadd.f32 0.0, %v664
    %666 = vmatmul.bf16.gmra.mxu0 %v569
    %v667 = vpop.f32.mrf.mxu0
    %v668 = vadd.f32 0.0, %v667
    %v669 = vpop.f32.mrf.mxu0
    %v670 = vadd.f32 0.0, %v669
    %671 = vmatmul.bf16.gmra.mxu0 %v570
    %v672 = vpop.f32.mrf.mxu0
    %v673 = vadd.f32 0.0, %v672
    %v674 = vpop.f32.mrf.mxu0
    %v675 = vadd.f32 0.0, %v674
    %676 = vmatmul.bf16.gmra.mxu0 %v571
    %v677 = vpop.f32.mrf.mxu0
    %v678 = vadd.f32 0.0, %v677
    %v679 = vpop.f32.mrf.mxu0
    %v680 = vadd.f32 0.0, %v679
    %681 = vmatmul.bf16.gmra.mxu0 %v572
    %v682 = vpop.f32.mrf.mxu0
    %v683 = vadd.f32 0.0, %v682
    %v684 = vpop.f32.mrf.mxu0
    %v685 = vadd.f32 0.0, %v684
    %686 = vdwg.mxu0
    %v687 = vadd.f32 %v477, %v648
    %v688 = vadd.f32 %v479, %v650
    %v689 = vadd.f32 %v482, %v653
    %v690 = vadd.f32 %v484, %v655
    %v691 = vadd.f32 %v487, %v658
    %v692 = vadd.f32 %v489, %v660
    %v693 = vadd.f32 %v492, %v663
    %v694 = vadd.f32 %v494, %v665
    %v695 = vadd.f32 %v497, %v668
    %v696 = vadd.f32 %v499, %v670
    %v697 = vadd.f32 %v502, %v673
    %v698 = vadd.f32 %v504, %v675
    %v699 = vadd.f32 %v507, %v678
    %v700 = vadd.f32 %v509, %v680
    %v701 = vadd.f32 %v512, %v683
    %v702 = vadd.f32 %v514, %v685
    %v703 = vld [vmem:[%s3] sm:$0x1]
    %v705 = vperm.slane %v703, 0
    %v707 = vadd.f32 %v687, %v705
    %v708 = vadd.f32 %v688, %v705
    %v709 = vadd.f32 %v689, %v705
    %v710 = vadd.f32 %v690, %v705
    %v711 = vadd.f32 %v691, %v705
    %v712 = vadd.f32 %v692, %v705
    %v713 = vadd.f32 %v693, %v705
    %v714 = vadd.f32 %v694, %v705
    %v715 = vadd.f32 %v695, %v705
    %v716 = vadd.f32 %v696, %v705
    %v717 = vadd.f32 %v697, %v705
    %v718 = vadd.f32 %v698, %v705
    %v719 = vadd.f32 %v699, %v705
    %v720 = vadd.f32 %v700, %v705
    %v721 = vadd.f32 %v701, %v705
    %v722 = vadd.f32 %v702, %v705
    %v723 = vmax.f32 %v707, 0.0
    %v724 = vmax.f32 %v708, 0.0
    %v725 = vmax.f32 %v709, 0.0
    %v726 = vmax.f32 %v710, 0.0
    %v727 = vmax.f32 %v711, 0.0
    %v728 = vmax.f32 %v712, 0.0
    %v729 = vmax.f32 %v713, 0.0
    %v730 = vmax.f32 %v714, 0.0
    %v731 = vmax.f32 %v715, 0.0
    %v732 = vmax.f32 %v716, 0.0
    %v733 = vmax.f32 %v717, 0.0
    %v734 = vmax.f32 %v718, 0.0
    %v735 = vmax.f32 %v719, 0.0
    %v736 = vmax.f32 %v720, 0.0
    %v737 = vmax.f32 %v721, 0.0
    %v738 = vmax.f32 %v722, 0.0
    %739 = vadd.xlane.f32.xlu0 %v723
    %v740 = vpop.xlane.xlu0 %739
    %741 = vadd.xlane.f32.xlu0 %v724
    %v742 = vpop.xlane.xlu0 %741
    %743 = vadd.xlane.f32.xlu0 %v725
    %v744 = vpop.xlane.xlu0 %743
    %745 = vadd.xlane.f32.xlu0 %v726
    %v746 = vpop.xlane.xlu0 %745
    %747 = vadd.xlane.f32.xlu0 %v727
    %v748 = vpop.xlane.xlu0 %747
    %749 = vadd.xlane.f32.xlu0 %v728
    %v750 = vpop.xlane.xlu0 %749
    %751 = vadd.xlane.f32.xlu0 %v729
    %v752 = vpop.xlane.xlu0 %751
    %753 = vadd.xlane.f32.xlu0 %v730
    %v754 = vpop.xlane.xlu0 %753
    %755 = vadd.xlane.f32.xlu0 %v731
    %v756 = vpop.xlane.xlu0 %755
    %757 = vadd.xlane.f32.xlu0 %v732
    %v758 = vpop.xlane.xlu0 %757
    %759 = vadd.xlane.f32.xlu0 %v733
    %v760 = vpop.xlane.xlu0 %759
    %761 = vadd.xlane.f32.xlu0 %v734
    %v762 = vpop.xlane.xlu0 %761
    %763 = vadd.xlane.f32.xlu0 %v735
    %v764 = vpop.xlane.xlu0 %763
    %765 = vadd.xlane.f32.xlu0 %v736
    %v766 = vpop.xlane.xlu0 %765
    %767 = vadd.xlane.f32.xlu0 %v737
    %v768 = vpop.xlane.xlu0 %767
    %769 = vadd.xlane.f32.xlu0 %v738
    %v770 = vpop.xlane.xlu0 %769
    %v771 = vmul.f32 %v740, 0.03125
    %v772 = vmul.f32 %v742, 0.03125
    %v773 = vmul.f32 %v744, 0.03125
    %v774 = vmul.f32 %v746, 0.03125
    %v775 = vmul.f32 %v748, 0.03125
    %v776 = vmul.f32 %v750, 0.03125
    %v777 = vmul.f32 %v752, 0.03125
    %v778 = vmul.f32 %v754, 0.03125
    %v779 = vmul.f32 %v756, 0.03125
    %v780 = vmul.f32 %v758, 0.03125
    %v781 = vmul.f32 %v760, 0.03125
    %v782 = vmul.f32 %v762, 0.03125
    %v783 = vmul.f32 %v764, 0.03125
    %v784 = vmul.f32 %v766, 0.03125
    %v785 = vmul.f32 %v768, 0.03125
    %v786 = vmul.f32 %v770, 0.03125
    %v787 = vsub.f32 %v723, %v771
    %v788 = vsub.f32 %v724, %v772
    %v789 = vsub.f32 %v725, %v773
    %v790 = vsub.f32 %v726, %v774
    %v791 = vsub.f32 %v727, %v775
    %v792 = vsub.f32 %v728, %v776
    %v793 = vsub.f32 %v729, %v777
    %v794 = vsub.f32 %v730, %v778
    %v795 = vsub.f32 %v731, %v779
    %v796 = vsub.f32 %v732, %v780
    %v797 = vsub.f32 %v733, %v781
    %v798 = vsub.f32 %v734, %v782
    %v799 = vsub.f32 %v735, %v783
    %v800 = vsub.f32 %v736, %v784
    %v801 = vsub.f32 %v737, %v785
    %v802 = vsub.f32 %v738, %v786
    %v803 = vmul.f32 %v787, %v135
    %v804 = vmul.f32 %v788, %v135
    %v805 = vmul.f32 %v789, %v135
    %v806 = vmul.f32 %v790, %v135
    %v807 = vmul.f32 %v791, %v135
    %v808 = vmul.f32 %v792, %v135
    %v809 = vmul.f32 %v793, %v135
    %v810 = vmul.f32 %v794, %v135
    %v811 = vmul.f32 %v795, %v135
    %v812 = vmul.f32 %v796, %v135
    %v813 = vmul.f32 %v797, %v135
    %v814 = vmul.f32 %v798, %v135
    %v815 = vmul.f32 %v799, %v135
    %v816 = vmul.f32 %v800, %v135
    %v817 = vmul.f32 %v801, %v135
    %v818 = vmul.f32 %v802, %v135
    %v819 = vmul.f32 %v803, %v803
    %v820 = vmul.f32 %v804, %v804
    %v821 = vmul.f32 %v805, %v805
    %v822 = vmul.f32 %v806, %v806
    %v823 = vmul.f32 %v807, %v807
    %v824 = vmul.f32 %v808, %v808
    %v825 = vmul.f32 %v809, %v809
    %v826 = vmul.f32 %v810, %v810
    %v827 = vmul.f32 %v811, %v811
    %v828 = vmul.f32 %v812, %v812
    %v829 = vmul.f32 %v813, %v813
    %v830 = vmul.f32 %v814, %v814
    %v831 = vmul.f32 %v815, %v815
    %v832 = vmul.f32 %v816, %v816
    %v833 = vmul.f32 %v817, %v817
    %v834 = vmul.f32 %v818, %v818
    %835 = vadd.xlane.f32.xlu0 %v819
    %v836 = vpop.xlane.xlu0 %835
    %837 = vadd.xlane.f32.xlu0 %v820
    %v838 = vpop.xlane.xlu0 %837
    %839 = vadd.xlane.f32.xlu0 %v821
    %v840 = vpop.xlane.xlu0 %839
    %841 = vadd.xlane.f32.xlu0 %v822
    %v842 = vpop.xlane.xlu0 %841
    %843 = vadd.xlane.f32.xlu0 %v823
    %v844 = vpop.xlane.xlu0 %843
    %845 = vadd.xlane.f32.xlu0 %v824
    %v846 = vpop.xlane.xlu0 %845
    %847 = vadd.xlane.f32.xlu0 %v825
    %v848 = vpop.xlane.xlu0 %847
    %849 = vadd.xlane.f32.xlu0 %v826
    %v850 = vpop.xlane.xlu0 %849
    %851 = vadd.xlane.f32.xlu0 %v827
    %v852 = vpop.xlane.xlu0 %851
    %853 = vadd.xlane.f32.xlu0 %v828
    %v854 = vpop.xlane.xlu0 %853
    %855 = vadd.xlane.f32.xlu0 %v829
    %v856 = vpop.xlane.xlu0 %855
    %857 = vadd.xlane.f32.xlu0 %v830
    %v858 = vpop.xlane.xlu0 %857
    %859 = vadd.xlane.f32.xlu0 %v831
    %v860 = vpop.xlane.xlu0 %859
    %861 = vadd.xlane.f32.xlu0 %v832
    %v862 = vpop.xlane.xlu0 %861
    %863 = vadd.xlane.f32.xlu0 %v833
    %v864 = vpop.xlane.xlu0 %863
    %865 = vadd.xlane.f32.xlu0 %v834
    %v866 = vpop.xlane.xlu0 %865
    %v867 = vmul.f32 %v836, 0.03125
    %v868 = vmul.f32 %v838, 0.03125
    %v869 = vmul.f32 %v840, 0.03125
    %v870 = vmul.f32 %v842, 0.03125
    %v871 = vmul.f32 %v844, 0.03125
    %v872 = vmul.f32 %v846, 0.03125
    %v873 = vmul.f32 %v848, 0.03125
    %v874 = vmul.f32 %v850, 0.03125
    %v875 = vmul.f32 %v852, 0.03125
    %v876 = vmul.f32 %v854, 0.03125
    %v877 = vmul.f32 %v856, 0.03125
    %v878 = vmul.f32 %v858, 0.03125
    %v879 = vmul.f32 %v860, 0.03125
    %v880 = vmul.f32 %v862, 0.03125
    %v881 = vmul.f32 %v864, 0.03125
    %v882 = vmul.f32 %v866, 0.03125
    %v883 = vadd.f32 %v867, 1e-05
    %v884 = vadd.f32 %v868, 1e-05
    %v885 = vadd.f32 %v869, 1e-05
    %v886 = vadd.f32 %v870, 1e-05
    %v887 = vadd.f32 %v871, 1e-05
    %v888 = vadd.f32 %v872, 1e-05
    %v889 = vadd.f32 %v873, 1e-05
    %v890 = vadd.f32 %v874, 1e-05
    %v891 = vadd.f32 %v875, 1e-05
    %v892 = vadd.f32 %v876, 1e-05
    %v893 = vadd.f32 %v877, 1e-05
    %v894 = vadd.f32 %v878, 1e-05
    %v895 = vadd.f32 %v879, 1e-05
    %v896 = vadd.f32 %v880, 1e-05
    %v897 = vadd.f32 %v881, 1e-05
    %v898 = vadd.f32 %v882, 1e-05
    %v899 = vrsqrt.pop %v883
    %v900 = vmul.f32 %v899, %v883
    %v901 = vmul.f32 %v900, %v899
    %v902 = vmul.f32 0.5, %v901
    %v903 = vsub.f32 1.5, %v902
    %v904 = vmul.f32 %v899, %v903
    %vm905 = vweird.f32 %v883
    %vm906 = vweird.f32 %v899
    %vm907 = vmor %vm905, %vm906
    %v908 = vsel %vm907, %v899, %v904
    %v909 = vrsqrt.pop %v884
    %v910 = vmul.f32 %v909, %v884
    %v911 = vmul.f32 %v910, %v909
    %v912 = vmul.f32 0.5, %v911
    %v913 = vsub.f32 1.5, %v912
    %v914 = vmul.f32 %v909, %v913
    %vm915 = vweird.f32 %v884
    %vm916 = vweird.f32 %v909
    %vm917 = vmor %vm915, %vm916
    %v918 = vsel %vm917, %v909, %v914
    %v919 = vrsqrt.pop %v885
    %v920 = vmul.f32 %v919, %v885
    %v921 = vmul.f32 %v920, %v919
    %v922 = vmul.f32 0.5, %v921
    %v923 = vsub.f32 1.5, %v922
    %v924 = vmul.f32 %v919, %v923
    %vm925 = vweird.f32 %v885
    %vm926 = vweird.f32 %v919
    %vm927 = vmor %vm925, %vm926
    %v928 = vsel %vm927, %v919, %v924
    %v929 = vrsqrt.pop %v886
    %v930 = vmul.f32 %v929, %v886
    %v931 = vmul.f32 %v930, %v929
    %v932 = vmul.f32 0.5, %v931
    %v933 = vsub.f32 1.5, %v932
    %v934 = vmul.f32 %v929, %v933
    %vm935 = vweird.f32 %v886
    %vm936 = vweird.f32 %v929
    %vm937 = vmor %vm935, %vm936
    %v938 = vsel %vm937, %v929, %v934
    %v939 = vrsqrt.pop %v887
    %v940 = vmul.f32 %v939, %v887
    %v941 = vmul.f32 %v940, %v939
    %v942 = vmul.f32 0.5, %v941
    %v943 = vsub.f32 1.5, %v942
    %v944 = vmul.f32 %v939, %v943
    %vm945 = vweird.f32 %v887
    %vm946 = vweird.f32 %v939
    %vm947 = vmor %vm945, %vm946
    %v948 = vsel %vm947, %v939, %v944
    %v949 = vrsqrt.pop %v888
    %v950 = vmul.f32 %v949, %v888
    %v951 = vmul.f32 %v950, %v949
    %v952 = vmul.f32 0.5, %v951
    %v953 = vsub.f32 1.5, %v952
    %v954 = vmul.f32 %v949, %v953
    %vm955 = vweird.f32 %v888
    %vm956 = vweird.f32 %v949
    %vm957 = vmor %vm955, %vm956
    %v958 = vsel %vm957, %v949, %v954
    %v959 = vrsqrt.pop %v889
    %v960 = vmul.f32 %v959, %v889
    %v961 = vmul.f32 %v960, %v959
    %v962 = vmul.f32 0.5, %v961
    %v963 = vsub.f32 1.5, %v962
    %v964 = vmul.f32 %v959, %v963
    %vm965 = vweird.f32 %v889
    %vm966 = vweird.f32 %v959
    %vm967 = vmor %vm965, %vm966
    %v968 = vsel %vm967, %v959, %v964
    %v969 = vrsqrt.pop %v890
    %v970 = vmul.f32 %v969, %v890
    %v971 = vmul.f32 %v970, %v969
    %v972 = vmul.f32 0.5, %v971
    %v973 = vsub.f32 1.5, %v972
    %v974 = vmul.f32 %v969, %v973
    %vm975 = vweird.f32 %v890
    %vm976 = vweird.f32 %v969
    %vm977 = vmor %vm975, %vm976
    %v978 = vsel %vm977, %v969, %v974
    %v979 = vrsqrt.pop %v891
    %v980 = vmul.f32 %v979, %v891
    %v981 = vmul.f32 %v980, %v979
    %v982 = vmul.f32 0.5, %v981
    %v983 = vsub.f32 1.5, %v982
    %v984 = vmul.f32 %v979, %v983
    %vm985 = vweird.f32 %v891
    %vm986 = vweird.f32 %v979
    %vm987 = vmor %vm985, %vm986
    %v988 = vsel %vm987, %v979, %v984
    %v989 = vrsqrt.pop %v892
    %v990 = vmul.f32 %v989, %v892
    %v991 = vmul.f32 %v990, %v989
    %v992 = vmul.f32 0.5, %v991
    %v993 = vsub.f32 1.5, %v992
    %v994 = vmul.f32 %v989, %v993
    %vm995 = vweird.f32 %v892
    %vm996 = vweird.f32 %v989
    %vm997 = vmor %vm995, %vm996
    %v998 = vsel %vm997, %v989, %v994
    %v999 = vrsqrt.pop %v893
    %v1000 = vmul.f32 %v999, %v893
    %v1001 = vmul.f32 %v1000, %v999
    %v1002 = vmul.f32 0.5, %v1001
    %v1003 = vsub.f32 1.5, %v1002
    %v1004 = vmul.f32 %v999, %v1003
    %vm1005 = vweird.f32 %v893
    %vm1006 = vweird.f32 %v999
    %vm1007 = vmor %vm1005, %vm1006
    %v1008 = vsel %vm1007, %v999, %v1004
    %v1009 = vrsqrt.pop %v894
    %v1010 = vmul.f32 %v1009, %v894
    %v1011 = vmul.f32 %v1010, %v1009
    %v1012 = vmul.f32 0.5, %v1011
    %v1013 = vsub.f32 1.5, %v1012
    %v1014 = vmul.f32 %v1009, %v1013
    %vm1015 = vweird.f32 %v894
    %vm1016 = vweird.f32 %v1009
    %vm1017 = vmor %vm1015, %vm1016
    %v1018 = vsel %vm1017, %v1009, %v1014
    %v1019 = vrsqrt.pop %v895
    %v1020 = vmul.f32 %v1019, %v895
    %v1021 = vmul.f32 %v1020, %v1019
    %v1022 = vmul.f32 0.5, %v1021
    %v1023 = vsub.f32 1.5, %v1022
    %v1024 = vmul.f32 %v1019, %v1023
    %vm1025 = vweird.f32 %v895
    %vm1026 = vweird.f32 %v1019
    %vm1027 = vmor %vm1025, %vm1026
    %v1028 = vsel %vm1027, %v1019, %v1024
    %v1029 = vrsqrt.pop %v896
    %v1030 = vmul.f32 %v1029, %v896
    %v1031 = vmul.f32 %v1030, %v1029
    %v1032 = vmul.f32 0.5, %v1031
    %v1033 = vsub.f32 1.5, %v1032
    %v1034 = vmul.f32 %v1029, %v1033
    %vm1035 = vweird.f32 %v896
    %vm1036 = vweird.f32 %v1029
    %vm1037 = vmor %vm1035, %vm1036
    %v1038 = vsel %vm1037, %v1029, %v1034
    %v1039 = vrsqrt.pop %v897
    %v1040 = vmul.f32 %v1039, %v897
    %v1041 = vmul.f32 %v1040, %v1039
    %v1042 = vmul.f32 0.5, %v1041
    %v1043 = vsub.f32 1.5, %v1042
    %v1044 = vmul.f32 %v1039, %v1043
    %vm1045 = vweird.f32 %v897
    %vm1046 = vweird.f32 %v1039
    %vm1047 = vmor %vm1045, %vm1046
    %v1048 = vsel %vm1047, %v1039, %v1044
    %v1049 = vrsqrt.pop %v898
    %v1050 = vmul.f32 %v1049, %v898
    %v1051 = vmul.f32 %v1050, %v1049
    %v1052 = vmul.f32 0.5, %v1051
    %v1053 = vsub.f32 1.5, %v1052
    %v1054 = vmul.f32 %v1049, %v1053
    %vm1055 = vweird.f32 %v898
    %vm1056 = vweird.f32 %v1049
    %vm1057 = vmor %vm1055, %vm1056
    %v1058 = vsel %vm1057, %v1049, %v1054
    %v1059 = vmul.f32 %v787, %v908
    %v1060 = vmul.f32 %v788, %v918
    %v1061 = vmul.f32 %v789, %v928
    %v1062 = vmul.f32 %v790, %v938
    %v1063 = vmul.f32 %v791, %v948
    %v1064 = vmul.f32 %v792, %v958
    %v1065 = vmul.f32 %v793, %v968
    %v1066 = vmul.f32 %v794, %v978
    %v1067 = vmul.f32 %v795, %v988
    %v1068 = vmul.f32 %v796, %v998
    %v1069 = vmul.f32 %v797, %v1008
    %v1070 = vmul.f32 %v798, %v1018
    %v1071 = vmul.f32 %v799, %v1028
    %v1072 = vmul.f32 %v800, %v1038
    %v1073 = vmul.f32 %v801, %v1048
    %v1074 = vmul.f32 %v802, %v1058
    %v1075 = vld [vmem:[%s4] sm:$0x1]
    %v1077 = vperm.slane %v1075, 0
    %v1079 = vmul.f32 %v1059, %v1077
    %v1080 = vmul.f32 %v1060, %v1077
    %v1081 = vmul.f32 %v1061, %v1077
    %v1082 = vmul.f32 %v1062, %v1077
    %v1083 = vmul.f32 %v1063, %v1077
    %v1084 = vmul.f32 %v1064, %v1077
    %v1085 = vmul.f32 %v1065, %v1077
    %v1086 = vmul.f32 %v1066, %v1077
    %v1087 = vmul.f32 %v1067, %v1077
    %v1088 = vmul.f32 %v1068, %v1077
    %v1089 = vmul.f32 %v1069, %v1077
    %v1090 = vmul.f32 %v1070, %v1077
    %v1091 = vmul.f32 %v1071, %v1077
    %v1092 = vmul.f32 %v1072, %v1077
    %v1093 = vmul.f32 %v1073, %v1077
    %v1094 = vmul.f32 %v1074, %v1077
    %v1095 = vld [vmem:[%s5] sm:$0x1]
    %v1097 = vperm.slane %v1095, 0
    %v1099 = vadd.f32 %v1079, %v1097
    %v1100 = vadd.f32 %v1080, %v1097
    %v1101 = vadd.f32 %v1081, %v1097
    %v1102 = vadd.f32 %v1082, %v1097
    %v1103 = vadd.f32 %v1083, %v1097
    %v1104 = vadd.f32 %v1084, %v1097
    %v1105 = vadd.f32 %v1085, %v1097
    %v1106 = vadd.f32 %v1086, %v1097
    %v1107 = vadd.f32 %v1087, %v1097
    %v1108 = vadd.f32 %v1088, %v1097
    %v1109 = vadd.f32 %v1089, %v1097
    %v1110 = vadd.f32 %v1090, %v1097
    %v1111 = vadd.f32 %v1091, %v1097
    %v1112 = vadd.f32 %v1092, %v1097
    %v1113 = vadd.f32 %v1093, %v1097
    %v1114 = vadd.f32 %v1094, %v1097
    %v1115 = vpack.c.bf16 %v1100, %v1099
    %v1116 = vpack.c.bf16 %v1102, %v1101
    %v1117 = vpack.c.bf16 %v1104, %v1103
    %v1118 = vpack.c.bf16 %v1106, %v1105
    %v1119 = vpack.c.bf16 %v1108, %v1107
    %v1120 = vpack.c.bf16 %v1110, %v1109
    %v1121 = vpack.c.bf16 %v1112, %v1111
    %v1122 = vpack.c.bf16 %v1114, %v1113
    %v1123 = vld [vmem:[#allocation8] sm:$0xf]
    %v1124 = vld [vmem:[#allocation8 + $0x4] sm:$0xf]
    %v1125 = vld [vmem:[#allocation8 + $0x8] sm:$0xf]
    %v1126 = vld [vmem:[#allocation8 + $0xc] sm:$0xf]
    %v1127 = vld [vmem:[#allocation8 + $0x10] sm:$0xf]
    %v1128 = vld [vmem:[#allocation8 + $0x14] sm:$0xf]
    %v1129 = vld [vmem:[#allocation8 + $0x18] sm:$0xf]
    %v1130 = vld [vmem:[#allocation8 + $0x1c] sm:$0xf]
    %v1131 = vld [vmem:[#allocation8 + $0x20] sm:$0xf]
    %v1132 = vld [vmem:[#allocation8 + $0x24] sm:$0xf]
    %v1133 = vld [vmem:[#allocation8 + $0x28] sm:$0xf]
    %v1134 = vld [vmem:[#allocation8 + $0x2c] sm:$0xf]
    %v1135 = vld [vmem:[#allocation8 + $0x30] sm:$0xf]
    %v1136 = vld [vmem:[#allocation8 + $0x34] sm:$0xf]
    %v1137 = vld [vmem:[#allocation8 + $0x38] sm:$0xf]
    %v1138 = vld [vmem:[#allocation8 + $0x3c] sm:$0xf]
    %1139 = vmatpush.bf16.msra.mxu0 %v1122
    %1140 = vmatpush.bf16.msra.mxu0 %v1121
    %1141 = vmatpush.bf16.msra.mxu0 %v1120
    %1142 = vmatpush.bf16.msra.mxu0 %v1119
    %1143 = vmatpush.bf16.msra.mxu0 %v1118
    %1144 = vmatpush.bf16.msra.mxu0 %v1117
    %1145 = vmatpush.bf16.msra.mxu0 %v1116
    %1146 = vmatpush.bf16.msra.mxu0 %v1115
    %1147 = vmatmul.bf16.gmra.mxu0 %v184
    %v1148 = vpop.f32.mrf.mxu0
    %v1149 = vadd.f32 0.0, %v1148
    %v1150 = vpop.f32.mrf.mxu0
    %v1151 = vadd.f32 0.0, %v1150
    %1152 = vmatmul.bf16.gmra.mxu0 %v185
    %v1153 = vpop.f32.mrf.mxu0
    %v1154 = vadd.f32 0.0, %v1153
    %v1155 = vpop.f32.mrf.mxu0
    %v1156 = vadd.f32 0.0, %v1155
    %1157 = vmatmul.bf16.gmra.mxu0 %v186
    %v1158 = vpop.f32.mrf.mxu0
    %v1159 = vadd.f32 0.0, %v1158
    %v1160 = vpop.f32.mrf.mxu0
    %v1161 = vadd.f32 0.0, %v1160
    %1162 = vmatmul.bf16.gmra.mxu0 %v187
    %v1163 = vpop.f32.mrf.mxu0
    %v1164 = vadd.f32 0.0, %v1163
    %v1165 = vpop.f32.mrf.mxu0
    %v1166 = vadd.f32 0.0, %v1165
    %1167 = vmatmul.bf16.gmra.mxu0 %v188
    %v1168 = vpop.f32.mrf.mxu0
    %v1169 = vadd.f32 0.0, %v1168
    %v1170 = vpop.f32.mrf.mxu0
    %v1171 = vadd.f32 0.0, %v1170
    %1172 = vmatmul.bf16.gmra.mxu0 %v189
    %v1173 = vpop.f32.mrf.mxu0
    %v1174 = vadd.f32 0.0, %v1173
    %v1175 = vpop.f32.mrf.mxu0
    %v1176 = vadd.f32 0.0, %v1175
    %1177 = vmatmul.bf16.gmra.mxu0 %v190
    %v1178 = vpop.f32.mrf.mxu0
    %v1179 = vadd.f32 0.0, %v1178
    %v1180 = vpop.f32.mrf.mxu0
    %v1181 = vadd.f32 0.0, %v1180
    %1182 = vmatmul.bf16.gmra.mxu0 %v191
    %v1183 = vpop.f32.mrf.mxu0
    %v1184 = vadd.f32 0.0, %v1183
    %v1185 = vpop.f32.mrf.mxu0
    %v1186 = vadd.f32 0.0, %v1185
    %1187 = vdwg.mxu0
    %v1188 = vpack.c.bf16 %v1151, %v1149
    %v1189 = vpack.c.bf16 %v1156, %v1154
    %v1190 = vpack.c.bf16 %v1161, %v1159
    %v1191 = vpack.c.bf16 %v1166, %v1164
    %v1192 = vpack.c.bf16 %v1171, %v1169
    %v1193 = vpack.c.bf16 %v1176, %v1174
    %v1194 = vpack.c.bf16 %v1181, %v1179
    %v1195 = vpack.c.bf16 %v1186, %v1184
    %s1196 = scalar_lea.vmem [#allocation8], 64
    %v1197 = vld [vmem:[%s1196] sm:$0xf]
    %v1198 = vld [vmem:[%s1196 + $0x4] sm:$0xf]
    %v1199 = vld [vmem:[%s1196 + $0x8] sm:$0xf]
    %v1200 = vld [vmem:[%s1196 + $0xc] sm:$0xf]
    %v1201 = vld [vmem:[%s1196 + $0x10] sm:$0xf]
    %v1202 = vld [vmem:[%s1196 + $0x14] sm:$0xf]
    %v1203 = vld [vmem:[%s1196 + $0x18] sm:$0xf]
    %v1204 = vld [vmem:[%s1196 + $0x1c] sm:$0xf]
    %v1205 = vld [vmem:[%s1196 + $0x20] sm:$0xf]
    %v1206 = vld [vmem:[%s1196 + $0x24] sm:$0xf]
    %v1207 = vld [vmem:[%s1196 + $0x28] sm:$0xf]
    %v1208 = vld [vmem:[%s1196 + $0x2c] sm:$0xf]
    %v1209 = vld [vmem:[%s1196 + $0x30] sm:$0xf]
    %v1210 = vld [vmem:[%s1196 + $0x34] sm:$0xf]
    %v1211 = vld [vmem:[%s1196 + $0x38] sm:$0xf]
    %v1212 = vld [vmem:[%s1196 + $0x3c] sm:$0xf]
    %v1229 = vunpack.c.l.b16 %v1197
    %v1230 = vunpack.c.l.b16 %v1198
    %v1231 = vunpack.c.l.b16 %v1199
    %v1232 = vunpack.c.l.b16 %v1200
    %v1233 = vunpack.c.l.b16 %v1201
    %v1234 = vunpack.c.l.b16 %v1202
    %v1235 = vunpack.c.l.b16 %v1203
    %v1236 = vunpack.c.l.b16 %v1204
    %v1237 = vunpack.c.l.b16 %v1205
    %v1238 = vunpack.c.l.b16 %v1206
    %v1239 = vunpack.c.l.b16 %v1207
    %v1240 = vunpack.c.l.b16 %v1208
    %v1241 = vunpack.c.l.b16 %v1209
    %v1242 = vunpack.c.l.b16 %v1210
    %v1243 = vunpack.c.l.b16 %v1211
    %v1244 = vunpack.c.l.b16 %v1212
    %v1245 = vpack.c.b16 %v1230, %v1229
    %v1246 = vpack.c.b16 %v1232, %v1231
    %v1247 = vpack.c.b16 %v1234, %v1233
    %v1248 = vpack.c.b16 %v1236, %v1235
    %v1249 = vpack.c.b16 %v1238, %v1237
    %v1250 = vpack.c.b16 %v1240, %v1239
    %v1251 = vpack.c.b16 %v1242, %v1241
    %v1252 = vpack.c.b16 %v1244, %v1243
    %1261 = vmatpush.bf16.msra.mxu0 %v1252
    %1262 = vmatpush.bf16.msra.mxu0 %v1251
    %1263 = vmatpush.bf16.msra.mxu0 %v1250
    %1264 = vmatpush.bf16.msra.mxu0 %v1249
    %1265 = vmatpush.bf16.msra.mxu0 %v1248
    %1266 = vmatpush.bf16.msra.mxu0 %v1247
    %1267 = vmatpush.bf16.msra.mxu0 %v1246
    %1268 = vmatpush.bf16.msra.mxu0 %v1245
    %1269 = vmatmul.bf16.gmra.mxu0 %v1188
    %v1270 = vpop.f32.mrf.mxu0
    %v1271 = vadd.f32 0.0, %v1270
    %v1272 = vpop.f32.mrf.mxu0
    %v1273 = vadd.f32 0.0, %v1272
    %1274 = vmatmul.bf16.gmra.mxu0 %v1189
    %v1275 = vpop.f32.mrf.mxu0
    %v1276 = vadd.f32 0.0, %v1275
    %v1277 = vpop.f32.mrf.mxu0
    %v1278 = vadd.f32 0.0, %v1277
    %1279 = vmatmul.bf16.gmra.mxu0 %v1190
    %v1280 = vpop.f32.mrf.mxu0
    %v1281 = vadd.f32 0.0, %v1280
    %v1282 = vpop.f32.mrf.mxu0
    %v1283 = vadd.f32 0.0, %v1282
    %1284 = vmatmul.bf16.gmra.mxu0 %v1191
    %v1285 = vpop.f32.mrf.mxu0
    %v1286 = vadd.f32 0.0, %v1285
    %v1287 = vpop.f32.mrf.mxu0
    %v1288 = vadd.f32 0.0, %v1287
    %1289 = vmatmul.bf16.gmra.mxu0 %v1192
    %v1290 = vpop.f32.mrf.mxu0
    %v1291 = vadd.f32 0.0, %v1290
    %v1292 = vpop.f32.mrf.mxu0
    %v1293 = vadd.f32 0.0, %v1292
    %1294 = vmatmul.bf16.gmra.mxu0 %v1193
    %v1295 = vpop.f32.mrf.mxu0
    %v1296 = vadd.f32 0.0, %v1295
    %v1297 = vpop.f32.mrf.mxu0
    %v1298 = vadd.f32 0.0, %v1297
    %1299 = vmatmul.bf16.gmra.mxu0 %v1194
    %v1300 = vpop.f32.mrf.mxu0
    %v1301 = vadd.f32 0.0, %v1300
    %v1302 = vpop.f32.mrf.mxu0
    %v1303 = vadd.f32 0.0, %v1302
    %1304 = vmatmul.bf16.gmra.mxu0 %v1195
    %v1305 = vpop.f32.mrf.mxu0
    %v1306 = vadd.f32 0.0, %v1305
    %v1307 = vpop.f32.mrf.mxu0
    %v1308 = vadd.f32 0.0, %v1307
    %1309 = vdwg.mxu0
    %v1326 = vunpack.c.l.b16 %v1123
    %v1327 = vunpack.c.l.b16 %v1124
    %v1328 = vunpack.c.l.b16 %v1125
    %v1329 = vunpack.c.l.b16 %v1126
    %v1330 = vunpack.c.l.b16 %v1127
    %v1331 = vunpack.c.l.b16 %v1128
    %v1332 = vunpack.c.l.b16 %v1129
    %v1333 = vunpack.c.l.b16 %v1130
    %v1334 = vunpack.c.l.b16 %v1131
    %v1335 = vunpack.c.l.b16 %v1132
    %v1336 = vunpack.c.l.b16 %v1133
    %v1337 = vunpack.c.l.b16 %v1134
    %v1338 = vunpack.c.l.b16 %v1135
    %v1339 = vunpack.c.l.b16 %v1136
    %v1340 = vunpack.c.l.b16 %v1137
    %v1341 = vunpack.c.l.b16 %v1138
    %v1342 = vpack.c.b16 %v1327, %v1326
    %v1343 = vpack.c.b16 %v1329, %v1328
    %v1344 = vpack.c.b16 %v1331, %v1330
    %v1345 = vpack.c.b16 %v1333, %v1332
    %v1346 = vpack.c.b16 %v1335, %v1334
    %v1347 = vpack.c.b16 %v1337, %v1336
    %v1348 = vpack.c.b16 %v1339, %v1338
    %v1349 = vpack.c.b16 %v1341, %v1340
    %1358 = vmatpush.bf16.msra.mxu0 %v1349
    %1359 = vmatpush.bf16.msra.mxu0 %v1348
    %1360 = vmatpush.bf16.msra.mxu0 %v1347
    %1361 = vmatpush.bf16.msra.mxu0 %v1346
    %1362 = vmatpush.bf16.msra.mxu0 %v1345
    %1363 = vmatpush.bf16.msra.mxu0 %v1344
    %1364 = vmatpush.bf16.msra.mxu0 %v1343
    %1365 = vmatpush.bf16.msra.mxu0 %v1342
    %1366 = vmatmul.bf16.gmra.mxu0 %v1115
    %v1367 = vpop.f32.mrf.mxu0
    %v1368 = vadd.f32 %v1271, %v1367
    %v1369 = vpop.f32.mrf.mxu0
    %v1370 = vadd.f32 %v1273, %v1369
    %1371 = vmatmul.bf16.gmra.mxu0 %v1116
    %v1372 = vpop.f32.mrf.mxu0
    %v1373 = vadd.f32 %v1276, %v1372
    %v1374 = vpop.f32.mrf.mxu0
    %v1375 = vadd.f32 %v1278, %v1374
    %1376 = vmatmul.bf16.gmra.mxu0 %v1117
    %v1377 = vpop.f32.mrf.mxu0
    %v1378 = vadd.f32 %v1281, %v1377
    %v1379 = vpop.f32.mrf.mxu0
    %v1380 = vadd.f32 %v1283, %v1379
    %1381 = vmatmul.bf16.gmra.mxu0 %v1118
    %v1382 = vpop.f32.mrf.mxu0
    %v1383 = vadd.f32 %v1286, %v1382
    %v1384 = vpop.f32.mrf.mxu0
    %v1385 = vadd.f32 %v1288, %v1384
    %1386 = vmatmul.bf16.gmra.mxu0 %v1119
    %v1387 = vpop.f32.mrf.mxu0
    %v1388 = vadd.f32 %v1291, %v1387
    %v1389 = vpop.f32.mrf.mxu0
    %v1390 = vadd.f32 %v1293, %v1389
    %1391 = vmatmul.bf16.gmra.mxu0 %v1120
    %v1392 = vpop.f32.mrf.mxu0
    %v1393 = vadd.f32 %v1296, %v1392
    %v1394 = vpop.f32.mrf.mxu0
    %v1395 = vadd.f32 %v1298, %v1394
    %1396 = vmatmul.bf16.gmra.mxu0 %v1121
    %v1397 = vpop.f32.mrf.mxu0
    %v1398 = vadd.f32 %v1301, %v1397
    %v1399 = vpop.f32.mrf.mxu0
    %v1400 = vadd.f32 %v1303, %v1399
    %1401 = vmatmul.bf16.gmra.mxu0 %v1122
    %v1402 = vpop.f32.mrf.mxu0
    %v1403 = vadd.f32 %v1306, %v1402
    %v1404 = vpop.f32.mrf.mxu0
    %v1405 = vadd.f32 %v1308, %v1404
    %1406 = vdwg.mxu0
    %1407 = vmatpush.bf16.msra.mxu0 %v1195
    %1408 = vmatpush.bf16.msra.mxu0 %v1194
    %1409 = vmatpush.bf16.msra.mxu0 %v1193
    %1410 = vmatpush.bf16.msra.mxu0 %v1192
    %1411 = vmatpush.bf16.msra.mxu0 %v1191
    %1412 = vmatpush.bf16.msra.mxu0 %v1190
    %1413 = vmatpush.bf16.msra.mxu0 %v1189
    %1414 = vmatpush.bf16.msra.mxu0 %v1188
    %1415 = vmatmul.bf16.gmra.mxu0 %v184
    %v1416 = vpop.f32.mrf.mxu0
    %v1417 = vadd.f32 0.0, %v1416
    %v1418 = vpop.f32.mrf.mxu0
    %v1419 = vadd.f32 0.0, %v1418
    %1420 = vmatmul.bf16.gmra.mxu0 %v185
    %v1421 = vpop.f32.mrf.mxu0
    %v1422 = vadd.f32 0.0, %v1421
    %v1423 = vpop.f32.mrf.mxu0
    %v1424 = vadd.f32 0.0, %v1423
    %1425 = vmatmul.bf16.gmra.mxu0 %v186
    %v1426 = vpop.f32.mrf.mxu0
    %v1427 = vadd.f32 0.0, %v1426
    %v1428 = vpop.f32.mrf.mxu0
    %v1429 = vadd.f32 0.0, %v1428
    %1430 = vmatmul.bf16.gmra.mxu0 %v187
    %v1431 = vpop.f32.mrf.mxu0
    %v1432 = vadd.f32 0.0, %v1431
    %v1433 = vpop.f32.mrf.mxu0
    %v1434 = vadd.f32 0.0, %v1433
    %1435 = vmatmul.bf16.gmra.mxu0 %v188
    %v1436 = vpop.f32.mrf.mxu0
    %v1437 = vadd.f32 0.0, %v1436
    %v1438 = vpop.f32.mrf.mxu0
    %v1439 = vadd.f32 0.0, %v1438
    %1440 = vmatmul.bf16.gmra.mxu0 %v189
    %v1441 = vpop.f32.mrf.mxu0
    %v1442 = vadd.f32 0.0, %v1441
    %v1443 = vpop.f32.mrf.mxu0
    %v1444 = vadd.f32 0.0, %v1443
    %1445 = vmatmul.bf16.gmra.mxu0 %v190
    %v1446 = vpop.f32.mrf.mxu0
    %v1447 = vadd.f32 0.0, %v1446
    %v1448 = vpop.f32.mrf.mxu0
    %v1449 = vadd.f32 0.0, %v1448
    %1450 = vmatmul.bf16.gmra.mxu0 %v191
    %v1451 = vpop.f32.mrf.mxu0
    %v1452 = vadd.f32 0.0, %v1451
    %v1453 = vpop.f32.mrf.mxu0
    %v1454 = vadd.f32 0.0, %v1453
    %1455 = vdwg.mxu0
    %v1456 = vpack.c.bf16 %v1419, %v1417
    %v1457 = vpack.c.bf16 %v1424, %v1422
    %v1458 = vpack.c.bf16 %v1429, %v1427
    %v1459 = vpack.c.bf16 %v1434, %v1432
    %v1460 = vpack.c.bf16 %v1439, %v1437
    %v1461 = vpack.c.bf16 %v1444, %v1442
    %v1462 = vpack.c.bf16 %v1449, %v1447
    %v1463 = vpack.c.bf16 %v1454, %v1452
    %s1464 = scalar_lea.vmem [#allocation8], 128
    %v1465 = vld [vmem:[%s1464] sm:$0xf]
    %v1466 = vld [vmem:[%s1464 + $0x4] sm:$0xf]
    %v1467 = vld [vmem:[%s1464 + $0x8] sm:$0xf]
    %v1468 = vld [vmem:[%s1464 + $0xc] sm:$0xf]
    %v1469 = vld [vmem:[%s1464 + $0x10] sm:$0xf]
    %v1470 = vld [vmem:[%s1464 + $0x14] sm:$0xf]
    %v1471 = vld [vmem:[%s1464 + $0x18] sm:$0xf]
    %v1472 = vld [vmem:[%s1464 + $0x1c] sm:$0xf]
    %v1473 = vld [vmem:[%s1464 + $0x20] sm:$0xf]
    %v1474 = vld [vmem:[%s1464 + $0x24] sm:$0xf]
    %v1475 = vld [vmem:[%s1464 + $0x28] sm:$0xf]
    %v1476 = vld [vmem:[%s1464 + $0x2c] sm:$0xf]
    %v1477 = vld [vmem:[%s1464 + $0x30] sm:$0xf]
    %v1478 = vld [vmem:[%s1464 + $0x34] sm:$0xf]
    %v1479 = vld [vmem:[%s1464 + $0x38] sm:$0xf]
    %v1480 = vld [vmem:[%s1464 + $0x3c] sm:$0xf]
    %v1497 = vunpack.c.l.b16 %v1465
    %v1498 = vunpack.c.l.b16 %v1466
    %v1499 = vunpack.c.l.b16 %v1467
    %v1500 = vunpack.c.l.b16 %v1468
    %v1501 = vunpack.c.l.b16 %v1469
    %v1502 = vunpack.c.l.b16 %v1470
    %v1503 = vunpack.c.l.b16 %v1471
    %v1504 = vunpack.c.l.b16 %v1472
    %v1505 = vunpack.c.l.b16 %v1473
    %v1506 = vunpack.c.l.b16 %v1474
    %v1507 = vunpack.c.l.b16 %v1475
    %v1508 = vunpack.c.l.b16 %v1476
    %v1509 = vunpack.c.l.b16 %v1477
    %v1510 = vunpack.c.l.b16 %v1478
    %v1511 = vunpack.c.l.b16 %v1479
    %v1512 = vunpack.c.l.b16 %v1480
    %v1513 = vpack.c.b16 %v1498, %v1497
    %v1514 = vpack.c.b16 %v1500, %v1499
    %v1515 = vpack.c.b16 %v1502, %v1501
    %v1516 = vpack.c.b16 %v1504, %v1503
    %v1517 = vpack.c.b16 %v1506, %v1505
    %v1518 = vpack.c.b16 %v1508, %v1507
    %v1519 = vpack.c.b16 %v1510, %v1509
    %v1520 = vpack.c.b16 %v1512, %v1511
    %1529 = vmatpush.bf16.msra.mxu0 %v1520
    %1530 = vmatpush.bf16.msra.mxu0 %v1519
    %1531 = vmatpush.bf16.msra.mxu0 %v1518
    %1532 = vmatpush.bf16.msra.mxu0 %v1517
    %1533 = vmatpush.bf16.msra.mxu0 %v1516
    %1534 = vmatpush.bf16.msra.mxu0 %v1515
    %1535 = vmatpush.bf16.msra.mxu0 %v1514
    %1536 = vmatpush.bf16.msra.mxu0 %v1513
    %1537 = vmatmul.bf16.gmra.mxu0 %v1456
    %v1538 = vpop.f32.mrf.mxu0
    %v1539 = vadd.f32 0.0, %v1538
    %v1540 = vpop.f32.mrf.mxu0
    %v1541 = vadd.f32 0.0, %v1540
    %1542 = vmatmul.bf16.gmra.mxu0 %v1457
    %v1543 = vpop.f32.mrf.mxu0
    %v1544 = vadd.f32 0.0, %v1543
    %v1545 = vpop.f32.mrf.mxu0
    %v1546 = vadd.f32 0.0, %v1545
    %1547 = vmatmul.bf16.gmra.mxu0 %v1458
    %v1548 = vpop.f32.mrf.mxu0
    %v1549 = vadd.f32 0.0, %v1548
    %v1550 = vpop.f32.mrf.mxu0
    %v1551 = vadd.f32 0.0, %v1550
    %1552 = vmatmul.bf16.gmra.mxu0 %v1459
    %v1553 = vpop.f32.mrf.mxu0
    %v1554 = vadd.f32 0.0, %v1553
    %v1555 = vpop.f32.mrf.mxu0
    %v1556 = vadd.f32 0.0, %v1555
    %1557 = vmatmul.bf16.gmra.mxu0 %v1460
    %v1558 = vpop.f32.mrf.mxu0
    %v1559 = vadd.f32 0.0, %v1558
    %v1560 = vpop.f32.mrf.mxu0
    %v1561 = vadd.f32 0.0, %v1560
    %1562 = vmatmul.bf16.gmra.mxu0 %v1461
    %v1563 = vpop.f32.mrf.mxu0
    %v1564 = vadd.f32 0.0, %v1563
    %v1565 = vpop.f32.mrf.mxu0
    %v1566 = vadd.f32 0.0, %v1565
    %1567 = vmatmul.bf16.gmra.mxu0 %v1462
    %v1568 = vpop.f32.mrf.mxu0
    %v1569 = vadd.f32 0.0, %v1568
    %v1570 = vpop.f32.mrf.mxu0
    %v1571 = vadd.f32 0.0, %v1570
    %1572 = vmatmul.bf16.gmra.mxu0 %v1463
    %v1573 = vpop.f32.mrf.mxu0
    %v1574 = vadd.f32 0.0, %v1573
    %v1575 = vpop.f32.mrf.mxu0
    %v1576 = vadd.f32 0.0, %v1575
    %1577 = vdwg.mxu0
    %v1578 = vadd.f32 %v1368, %v1539
    %v1579 = vadd.f32 %v1370, %v1541
    %v1580 = vadd.f32 %v1373, %v1544
    %v1581 = vadd.f32 %v1375, %v1546
    %v1582 = vadd.f32 %v1378, %v1549
    %v1583 = vadd.f32 %v1380, %v1551
    %v1584 = vadd.f32 %v1383, %v1554
    %v1585 = vadd.f32 %v1385, %v1556
    %v1586 = vadd.f32 %v1388, %v1559
    %v1587 = vadd.f32 %v1390, %v1561
    %v1588 = vadd.f32 %v1393, %v1564
    %v1589 = vadd.f32 %v1395, %v1566
    %v1590 = vadd.f32 %v1398, %v1569
    %v1591 = vadd.f32 %v1400, %v1571
    %v1592 = vadd.f32 %v1403, %v1574
    %v1593 = vadd.f32 %v1405, %v1576
    %v1594 = vld [vmem:[%s7] sm:$0x1]
    %v1596 = vperm.slane %v1594, 0
    %v1598 = vadd.f32 %v1578, %v1596
    %v1599 = vadd.f32 %v1579, %v1596
    %v1600 = vadd.f32 %v1580, %v1596
    %v1601 = vadd.f32 %v1581, %v1596
    %v1602 = vadd.f32 %v1582, %v1596
    %v1603 = vadd.f32 %v1583, %v1596
    %v1604 = vadd.f32 %v1584, %v1596
    %v1605 = vadd.f32 %v1585, %v1596
    %v1606 = vadd.f32 %v1586, %v1596
    %v1607 = vadd.f32 %v1587, %v1596
    %v1608 = vadd.f32 %v1588, %v1596
    %v1609 = vadd.f32 %v1589, %v1596
    %v1610 = vadd.f32 %v1590, %v1596
    %v1611 = vadd.f32 %v1591, %v1596
    %v1612 = vadd.f32 %v1592, %v1596
    %v1613 = vadd.f32 %v1593, %v1596
    %v1614 = vmax.f32 %v1598, 0.0
    %v1615 = vmax.f32 %v1599, 0.0
    %v1616 = vmax.f32 %v1600, 0.0
    %v1617 = vmax.f32 %v1601, 0.0
    %v1618 = vmax.f32 %v1602, 0.0
    %v1619 = vmax.f32 %v1603, 0.0
    %v1620 = vmax.f32 %v1604, 0.0
    %v1621 = vmax.f32 %v1605, 0.0
    %v1622 = vmax.f32 %v1606, 0.0
    %v1623 = vmax.f32 %v1607, 0.0
    %v1624 = vmax.f32 %v1608, 0.0
    %v1625 = vmax.f32 %v1609, 0.0
    %v1626 = vmax.f32 %v1610, 0.0
    %v1627 = vmax.f32 %v1611, 0.0
    %v1628 = vmax.f32 %v1612, 0.0
    %v1629 = vmax.f32 %v1613, 0.0
    %1630 = vadd.xlane.f32.xlu0 %v1614
    %v1631 = vpop.xlane.xlu0 %1630
    %1632 = vadd.xlane.f32.xlu0 %v1615
    %v1633 = vpop.xlane.xlu0 %1632
    %1634 = vadd.xlane.f32.xlu0 %v1616
    %v1635 = vpop.xlane.xlu0 %1634
    %1636 = vadd.xlane.f32.xlu0 %v1617
    %v1637 = vpop.xlane.xlu0 %1636
    %1638 = vadd.xlane.f32.xlu0 %v1618
    %v1639 = vpop.xlane.xlu0 %1638
    %1640 = vadd.xlane.f32.xlu0 %v1619
    %v1641 = vpop.xlane.xlu0 %1640
    %1642 = vadd.xlane.f32.xlu0 %v1620
    %v1643 = vpop.xlane.xlu0 %1642
    %1644 = vadd.xlane.f32.xlu0 %v1621
    %v1645 = vpop.xlane.xlu0 %1644
    %1646 = vadd.xlane.f32.xlu0 %v1622
    %v1647 = vpop.xlane.xlu0 %1646
    %1648 = vadd.xlane.f32.xlu0 %v1623
    %v1649 = vpop.xlane.xlu0 %1648
    %1650 = vadd.xlane.f32.xlu0 %v1624
    %v1651 = vpop.xlane.xlu0 %1650
    %1652 = vadd.xlane.f32.xlu0 %v1625
    %v1653 = vpop.xlane.xlu0 %1652
    %1654 = vadd.xlane.f32.xlu0 %v1626
    %v1655 = vpop.xlane.xlu0 %1654
    %1656 = vadd.xlane.f32.xlu0 %v1627
    %v1657 = vpop.xlane.xlu0 %1656
    %1658 = vadd.xlane.f32.xlu0 %v1628
    %v1659 = vpop.xlane.xlu0 %1658
    %1660 = vadd.xlane.f32.xlu0 %v1629
    %v1661 = vpop.xlane.xlu0 %1660
    %v1662 = vmul.f32 %v1631, 0.03125
    %v1663 = vmul.f32 %v1633, 0.03125
    %v1664 = vmul.f32 %v1635, 0.03125
    %v1665 = vmul.f32 %v1637, 0.03125
    %v1666 = vmul.f32 %v1639, 0.03125
    %v1667 = vmul.f32 %v1641, 0.03125
    %v1668 = vmul.f32 %v1643, 0.03125
    %v1669 = vmul.f32 %v1645, 0.03125
    %v1670 = vmul.f32 %v1647, 0.03125
    %v1671 = vmul.f32 %v1649, 0.03125
    %v1672 = vmul.f32 %v1651, 0.03125
    %v1673 = vmul.f32 %v1653, 0.03125
    %v1674 = vmul.f32 %v1655, 0.03125
    %v1675 = vmul.f32 %v1657, 0.03125
    %v1676 = vmul.f32 %v1659, 0.03125
    %v1677 = vmul.f32 %v1661, 0.03125
    %v1678 = vsub.f32 %v1614, %v1662
    %v1679 = vsub.f32 %v1615, %v1663
    %v1680 = vsub.f32 %v1616, %v1664
    %v1681 = vsub.f32 %v1617, %v1665
    %v1682 = vsub.f32 %v1618, %v1666
    %v1683 = vsub.f32 %v1619, %v1667
    %v1684 = vsub.f32 %v1620, %v1668
    %v1685 = vsub.f32 %v1621, %v1669
    %v1686 = vsub.f32 %v1622, %v1670
    %v1687 = vsub.f32 %v1623, %v1671
    %v1688 = vsub.f32 %v1624, %v1672
    %v1689 = vsub.f32 %v1625, %v1673
    %v1690 = vsub.f32 %v1626, %v1674
    %v1691 = vsub.f32 %v1627, %v1675
    %v1692 = vsub.f32 %v1628, %v1676
    %v1693 = vsub.f32 %v1629, %v1677
    %v1694 = vmul.f32 %v1678, %v135
    %v1695 = vmul.f32 %v1679, %v135
    %v1696 = vmul.f32 %v1680, %v135
    %v1697 = vmul.f32 %v1681, %v135
    %v1698 = vmul.f32 %v1682, %v135
    %v1699 = vmul.f32 %v1683, %v135
    %v1700 = vmul.f32 %v1684, %v135
    %v1701 = vmul.f32 %v1685, %v135
    %v1702 = vmul.f32 %v1686, %v135
    %v1703 = vmul.f32 %v1687, %v135
    %v1704 = vmul.f32 %v1688, %v135
    %v1705 = vmul.f32 %v1689, %v135
    %v1706 = vmul.f32 %v1690, %v135
    %v1707 = vmul.f32 %v1691, %v135
    %v1708 = vmul.f32 %v1692, %v135
    %v1709 = vmul.f32 %v1693, %v135
    %v1710 = vmul.f32 %v1694, %v1694
    %v1711 = vmul.f32 %v1695, %v1695
    %v1712 = vmul.f32 %v1696, %v1696
    %v1713 = vmul.f32 %v1697, %v1697
    %v1714 = vmul.f32 %v1698, %v1698
    %v1715 = vmul.f32 %v1699, %v1699
    %v1716 = vmul.f32 %v1700, %v1700
    %v1717 = vmul.f32 %v1701, %v1701
    %v1718 = vmul.f32 %v1702, %v1702
    %v1719 = vmul.f32 %v1703, %v1703
    %v1720 = vmul.f32 %v1704, %v1704
    %v1721 = vmul.f32 %v1705, %v1705
    %v1722 = vmul.f32 %v1706, %v1706
    %v1723 = vmul.f32 %v1707, %v1707
    %v1724 = vmul.f32 %v1708, %v1708
    %v1725 = vmul.f32 %v1709, %v1709
    %1726 = vadd.xlane.f32.xlu0 %v1710
    %v1727 = vpop.xlane.xlu0 %1726
    %1728 = vadd.xlane.f32.xlu0 %v1711
    %v1729 = vpop.xlane.xlu0 %1728
    %1730 = vadd.xlane.f32.xlu0 %v1712
    %v1731 = vpop.xlane.xlu0 %1730
    %1732 = vadd.xlane.f32.xlu0 %v1713
    %v1733 = vpop.xlane.xlu0 %1732
    %1734 = vadd.xlane.f32.xlu0 %v1714
    %v1735 = vpop.xlane.xlu0 %1734
    %1736 = vadd.xlane.f32.xlu0 %v1715
    %v1737 = vpop.xlane.xlu0 %1736
    %1738 = vadd.xlane.f32.xlu0 %v1716
    %v1739 = vpop.xlane.xlu0 %1738
    %1740 = vadd.xlane.f32.xlu0 %v1717
    %v1741 = vpop.xlane.xlu0 %1740
    %1742 = vadd.xlane.f32.xlu0 %v1718
    %v1743 = vpop.xlane.xlu0 %1742
    %1744 = vadd.xlane.f32.xlu0 %v1719
    %v1745 = vpop.xlane.xlu0 %1744
    %1746 = vadd.xlane.f32.xlu0 %v1720
    %v1747 = vpop.xlane.xlu0 %1746
    %1748 = vadd.xlane.f32.xlu0 %v1721
    %v1749 = vpop.xlane.xlu0 %1748
    %1750 = vadd.xlane.f32.xlu0 %v1722
    %v1751 = vpop.xlane.xlu0 %1750
    %1752 = vadd.xlane.f32.xlu0 %v1723
    %v1753 = vpop.xlane.xlu0 %1752
    %1754 = vadd.xlane.f32.xlu0 %v1724
    %v1755 = vpop.xlane.xlu0 %1754
    %1756 = vadd.xlane.f32.xlu0 %v1725
    %v1757 = vpop.xlane.xlu0 %1756
    %v1758 = vmul.f32 %v1727, 0.03125
    %v1759 = vmul.f32 %v1729, 0.03125
    %v1760 = vmul.f32 %v1731, 0.03125
    %v1761 = vmul.f32 %v1733, 0.03125
    %v1762 = vmul.f32 %v1735, 0.03125
    %v1763 = vmul.f32 %v1737, 0.03125
    %v1764 = vmul.f32 %v1739, 0.03125
    %v1765 = vmul.f32 %v1741, 0.03125
    %v1766 = vmul.f32 %v1743, 0.03125
    %v1767 = vmul.f32 %v1745, 0.03125
    %v1768 = vmul.f32 %v1747, 0.03125
    %v1769 = vmul.f32 %v1749, 0.03125
    %v1770 = vmul.f32 %v1751, 0.03125
    %v1771 = vmul.f32 %v1753, 0.03125
    %v1772 = vmul.f32 %v1755, 0.03125
    %v1773 = vmul.f32 %v1757, 0.03125
    %v1774 = vadd.f32 %v1758, 1e-05
    %v1775 = vadd.f32 %v1759, 1e-05
    %v1776 = vadd.f32 %v1760, 1e-05
    %v1777 = vadd.f32 %v1761, 1e-05
    %v1778 = vadd.f32 %v1762, 1e-05
    %v1779 = vadd.f32 %v1763, 1e-05
    %v1780 = vadd.f32 %v1764, 1e-05
    %v1781 = vadd.f32 %v1765, 1e-05
    %v1782 = vadd.f32 %v1766, 1e-05
    %v1783 = vadd.f32 %v1767, 1e-05
    %v1784 = vadd.f32 %v1768, 1e-05
    %v1785 = vadd.f32 %v1769, 1e-05
    %v1786 = vadd.f32 %v1770, 1e-05
    %v1787 = vadd.f32 %v1771, 1e-05
    %v1788 = vadd.f32 %v1772, 1e-05
    %v1789 = vadd.f32 %v1773, 1e-05
    %v1790 = vrsqrt.pop %v1774
    %v1791 = vmul.f32 %v1790, %v1774
    %v1792 = vmul.f32 %v1791, %v1790
    %v1793 = vmul.f32 0.5, %v1792
    %v1794 = vsub.f32 1.5, %v1793
    %v1795 = vmul.f32 %v1790, %v1794
    %vm1796 = vweird.f32 %v1774
    %vm1797 = vweird.f32 %v1790
    %vm1798 = vmor %vm1796, %vm1797
    %v1799 = vsel %vm1798, %v1790, %v1795
    %v1800 = vrsqrt.pop %v1775
    %v1801 = vmul.f32 %v1800, %v1775
    %v1802 = vmul.f32 %v1801, %v1800
    %v1803 = vmul.f32 0.5, %v1802
    %v1804 = vsub.f32 1.5, %v1803
    %v1805 = vmul.f32 %v1800, %v1804
    %vm1806 = vweird.f32 %v1775
    %vm1807 = vweird.f32 %v1800
    %vm1808 = vmor %vm1806, %vm1807
    %v1809 = vsel %vm1808, %v1800, %v1805
    %v1810 = vrsqrt.pop %v1776
    %v1811 = vmul.f32 %v1810, %v1776
    %v1812 = vmul.f32 %v1811, %v1810
    %v1813 = vmul.f32 0.5, %v1812
    %v1814 = vsub.f32 1.5, %v1813
    %v1815 = vmul.f32 %v1810, %v1814
    %vm1816 = vweird.f32 %v1776
    %vm1817 = vweird.f32 %v1810
    %vm1818 = vmor %vm1816, %vm1817
    %v1819 = vsel %vm1818, %v1810, %v1815
    %v1820 = vrsqrt.pop %v1777
    %v1821 = vmul.f32 %v1820, %v1777
    %v1822 = vmul.f32 %v1821, %v1820
    %v1823 = vmul.f32 0.5, %v1822
    %v1824 = vsub.f32 1.5, %v1823
    %v1825 = vmul.f32 %v1820, %v1824
    %vm1826 = vweird.f32 %v1777
    %vm1827 = vweird.f32 %v1820
    %vm1828 = vmor %vm1826, %vm1827
    %v1829 = vsel %vm1828, %v1820, %v1825
    %v1830 = vrsqrt.pop %v1778
    %v1831 = vmul.f32 %v1830, %v1778
    %v1832 = vmul.f32 %v1831, %v1830
    %v1833 = vmul.f32 0.5, %v1832
    %v1834 = vsub.f32 1.5, %v1833
    %v1835 = vmul.f32 %v1830, %v1834
    %vm1836 = vweird.f32 %v1778
    %vm1837 = vweird.f32 %v1830
    %vm1838 = vmor %vm1836, %vm1837
    %v1839 = vsel %vm1838, %v1830, %v1835
    %v1840 = vrsqrt.pop %v1779
    %v1841 = vmul.f32 %v1840, %v1779
    %v1842 = vmul.f32 %v1841, %v1840
    %v1843 = vmul.f32 0.5, %v1842
    %v1844 = vsub.f32 1.5, %v1843
    %v1845 = vmul.f32 %v1840, %v1844
    %vm1846 = vweird.f32 %v1779
    %vm1847 = vweird.f32 %v1840
    %vm1848 = vmor %vm1846, %vm1847
    %v1849 = vsel %vm1848, %v1840, %v1845
    %v1850 = vrsqrt.pop %v1780
    %v1851 = vmul.f32 %v1850, %v1780
    %v1852 = vmul.f32 %v1851, %v1850
    %v1853 = vmul.f32 0.5, %v1852
    %v1854 = vsub.f32 1.5, %v1853
    %v1855 = vmul.f32 %v1850, %v1854
    %vm1856 = vweird.f32 %v1780
    %vm1857 = vweird.f32 %v1850
    %vm1858 = vmor %vm1856, %vm1857
    %v1859 = vsel %vm1858, %v1850, %v1855
    %v1860 = vrsqrt.pop %v1781
    %v1861 = vmul.f32 %v1860, %v1781
    %v1862 = vmul.f32 %v1861, %v1860
    %v1863 = vmul.f32 0.5, %v1862
    %v1864 = vsub.f32 1.5, %v1863
    %v1865 = vmul.f32 %v1860, %v1864
    %vm1866 = vweird.f32 %v1781
    %vm1867 = vweird.f32 %v1860
    %vm1868 = vmor %vm1866, %vm1867
    %v1869 = vsel %vm1868, %v1860, %v1865
    %v1870 = vrsqrt.pop %v1782
    %v1871 = vmul.f32 %v1870, %v1782
    %v1872 = vmul.f32 %v1871, %v1870
    %v1873 = vmul.f32 0.5, %v1872
    %v1874 = vsub.f32 1.5, %v1873
    %v1875 = vmul.f32 %v1870, %v1874
    %vm1876 = vweird.f32 %v1782
    %vm1877 = vweird.f32 %v1870
    %vm1878 = vmor %vm1876, %vm1877
    %v1879 = vsel %vm1878, %v1870, %v1875
    %v1880 = vrsqrt.pop %v1783
    %v1881 = vmul.f32 %v1880, %v1783
    %v1882 = vmul.f32 %v1881, %v1880
    %v1883 = vmul.f32 0.5, %v1882
    %v1884 = vsub.f32 1.5, %v1883
    %v1885 = vmul.f32 %v1880, %v1884
    %vm1886 = vweird.f32 %v1783
    %vm1887 = vweird.f32 %v1880
    %vm1888 = vmor %vm1886, %vm1887
    %v1889 = vsel %vm1888, %v1880, %v1885
    %v1890 = vrsqrt.pop %v1784
    %v1891 = vmul.f32 %v1890, %v1784
    %v1892 = vmul.f32 %v1891, %v1890
    %v1893 = vmul.f32 0.5, %v1892
    %v1894 = vsub.f32 1.5, %v1893
    %v1895 = vmul.f32 %v1890, %v1894
    %vm1896 = vweird.f32 %v1784
    %vm1897 = vweird.f32 %v1890
    %vm1898 = vmor %vm1896, %vm1897
    %v1899 = vsel %vm1898, %v1890, %v1895
    %v1900 = vrsqrt.pop %v1785
    %v1901 = vmul.f32 %v1900, %v1785
    %v1902 = vmul.f32 %v1901, %v1900
    %v1903 = vmul.f32 0.5, %v1902
    %v1904 = vsub.f32 1.5, %v1903
    %v1905 = vmul.f32 %v1900, %v1904
    %vm1906 = vweird.f32 %v1785
    %vm1907 = vweird.f32 %v1900
    %vm1908 = vmor %vm1906, %vm1907
    %v1909 = vsel %vm1908, %v1900, %v1905
    %v1910 = vrsqrt.pop %v1786
    %v1911 = vmul.f32 %v1910, %v1786
    %v1912 = vmul.f32 %v1911, %v1910
    %v1913 = vmul.f32 0.5, %v1912
    %v1914 = vsub.f32 1.5, %v1913
    %v1915 = vmul.f32 %v1910, %v1914
    %vm1916 = vweird.f32 %v1786
    %vm1917 = vweird.f32 %v1910
    %vm1918 = vmor %vm1916, %vm1917
    %v1919 = vsel %vm1918, %v1910, %v1915
    %v1920 = vrsqrt.pop %v1787
    %v1921 = vmul.f32 %v1920, %v1787
    %v1922 = vmul.f32 %v1921, %v1920
    %v1923 = vmul.f32 0.5, %v1922
    %v1924 = vsub.f32 1.5, %v1923
    %v1925 = vmul.f32 %v1920, %v1924
    %vm1926 = vweird.f32 %v1787
    %vm1927 = vweird.f32 %v1920
    %vm1928 = vmor %vm1926, %vm1927
    %v1929 = vsel %vm1928, %v1920, %v1925
    %v1930 = vrsqrt.pop %v1788
    %v1931 = vmul.f32 %v1930, %v1788
    %v1932 = vmul.f32 %v1931, %v1930
    %v1933 = vmul.f32 0.5, %v1932
    %v1934 = vsub.f32 1.5, %v1933
    %v1935 = vmul.f32 %v1930, %v1934
    %vm1936 = vweird.f32 %v1788
    %vm1937 = vweird.f32 %v1930
    %vm1938 = vmor %vm1936, %vm1937
    %v1939 = vsel %vm1938, %v1930, %v1935
    %v1940 = vrsqrt.pop %v1789
    %v1941 = vmul.f32 %v1940, %v1789
    %v1942 = vmul.f32 %v1941, %v1940
    %v1943 = vmul.f32 0.5, %v1942
    %v1944 = vsub.f32 1.5, %v1943
    %v1945 = vmul.f32 %v1940, %v1944
    %vm1946 = vweird.f32 %v1789
    %vm1947 = vweird.f32 %v1940
    %vm1948 = vmor %vm1946, %vm1947
    %v1949 = vsel %vm1948, %v1940, %v1945
    %v1950 = vmul.f32 %v1678, %v1799
    %v1951 = vmul.f32 %v1679, %v1809
    %v1952 = vmul.f32 %v1680, %v1819
    %v1953 = vmul.f32 %v1681, %v1829
    %v1954 = vmul.f32 %v1682, %v1839
    %v1955 = vmul.f32 %v1683, %v1849
    %v1956 = vmul.f32 %v1684, %v1859
    %v1957 = vmul.f32 %v1685, %v1869
    %v1958 = vmul.f32 %v1686, %v1879
    %v1959 = vmul.f32 %v1687, %v1889
    %v1960 = vmul.f32 %v1688, %v1899
    %v1961 = vmul.f32 %v1689, %v1909
    %v1962 = vmul.f32 %v1690, %v1919
    %v1963 = vmul.f32 %v1691, %v1929
    %v1964 = vmul.f32 %v1692, %v1939
    %v1965 = vmul.f32 %v1693, %v1949
    %v1966 = vld [vmem:[%s8] sm:$0x1]
    %v1968 = vperm.slane %v1966, 0
    %v1970 = vmul.f32 %v1950, %v1968
    %v1971 = vmul.f32 %v1951, %v1968
    %v1972 = vmul.f32 %v1952, %v1968
    %v1973 = vmul.f32 %v1953, %v1968
    %v1974 = vmul.f32 %v1954, %v1968
    %v1975 = vmul.f32 %v1955, %v1968
    %v1976 = vmul.f32 %v1956, %v1968
    %v1977 = vmul.f32 %v1957, %v1968
    %v1978 = vmul.f32 %v1958, %v1968
    %v1979 = vmul.f32 %v1959, %v1968
    %v1980 = vmul.f32 %v1960, %v1968
    %v1981 = vmul.f32 %v1961, %v1968
    %v1982 = vmul.f32 %v1962, %v1968
    %v1983 = vmul.f32 %v1963, %v1968
    %v1984 = vmul.f32 %v1964, %v1968
    %v1985 = vmul.f32 %v1965, %v1968
    %v1986 = vld [vmem:[%s9] sm:$0x1]
    %v1988 = vperm.slane %v1986, 0
    %v1990 = vadd.f32 %v1970, %v1988
    %v1991 = vadd.f32 %v1971, %v1988
    %v1992 = vadd.f32 %v1972, %v1988
    %v1993 = vadd.f32 %v1973, %v1988
    %v1994 = vadd.f32 %v1974, %v1988
    %v1995 = vadd.f32 %v1975, %v1988
    %v1996 = vadd.f32 %v1976, %v1988
    %v1997 = vadd.f32 %v1977, %v1988
    %v1998 = vadd.f32 %v1978, %v1988
    %v1999 = vadd.f32 %v1979, %v1988
    %v2000 = vadd.f32 %v1980, %v1988
    %v2001 = vadd.f32 %v1981, %v1988
    %v2002 = vadd.f32 %v1982, %v1988
    %v2003 = vadd.f32 %v1983, %v1988
    %v2004 = vadd.f32 %v1984, %v1988
    %v2005 = vadd.f32 %v1985, %v1988
    %v2006 = vpack.c.bf16 %v1990, %v1990
    %v2007 = vpack.c.bf16 %v1991, %v1991
    %v2008 = vpack.c.bf16 %v1992, %v1992
    %v2009 = vpack.c.bf16 %v1993, %v1993
    %v2010 = vpack.c.bf16 %v1994, %v1994
    %v2011 = vpack.c.bf16 %v1995, %v1995
    %v2012 = vpack.c.bf16 %v1996, %v1996
    %v2013 = vpack.c.bf16 %v1997, %v1997
    %v2014 = vpack.c.bf16 %v1998, %v1998
    %v2015 = vpack.c.bf16 %v1999, %v1999
    %v2016 = vpack.c.bf16 %v2000, %v2000
    %v2017 = vpack.c.bf16 %v2001, %v2001
    %v2018 = vpack.c.bf16 %v2002, %v2002
    %v2019 = vpack.c.bf16 %v2003, %v2003
    %v2020 = vpack.c.bf16 %v2004, %v2004
    %v2021 = vpack.c.bf16 %v2005, %v2005
    %2022 = vst [vmem:[#allocation10] sm:$0xf] %v2006
    %2023 = vst [vmem:[#allocation10 + $0x4] sm:$0xf] %v2007
    %2024 = vst [vmem:[#allocation10 + $0x8] sm:$0xf] %v2008
    %2025 = vst [vmem:[#allocation10 + $0xc] sm:$0xf] %v2009
    %2026 = vst [vmem:[#allocation10 + $0x10] sm:$0xf] %v2010
    %2027 = vst [vmem:[#allocation10 + $0x14] sm:$0xf] %v2011
    %2028 = vst [vmem:[#allocation10 + $0x18] sm:$0xf] %v2012
    %2029 = vst [vmem:[#allocation10 + $0x1c] sm:$0xf] %v2013
    %2030 = vst [vmem:[#allocation10 + $0x20] sm:$0xf] %v2014
    %2031 = vst [vmem:[#allocation10 + $0x24] sm:$0xf] %v2015
    %2032 = vst [vmem:[#allocation10 + $0x28] sm:$0xf] %v2016
    %2033 = vst [vmem:[#allocation10 + $0x2c] sm:$0xf] %v2017
    %2034 = vst [vmem:[#allocation10 + $0x30] sm:$0xf] %v2018
    %2035 = vst [vmem:[#allocation10 + $0x34] sm:$0xf] %v2019
    %2036 = vst [vmem:[#allocation10 + $0x38] sm:$0xf] %v2020
    %2037 = vst [vmem:[#allocation10 + $0x3c] sm:$0xf] %v2021
    // Predicated region
    $region58: #{tpu_custom_call.1} parent=1 // pred_check
      _
    $region59: #{tpu_custom_call.1} parent=1 // pred_check_branch
      %2039 = sbr.rel (0) target = $region61
    $region60: #{tpu_custom_call.1} parent=1 // pred_region
      %2041 = vsyncadd [#allocation4], 0
      %s2042 = sshll.u32 [#allocation10], 4
      %s2043 = int_to_ptr.vmem [resolvable:$true] %s2042
      %s2044 = sshll.u32 %s10, 4
      %s2045 = int_to_ptr.hbm [resolvable:$true] %s2044
      %2050 = dma.vmem_to_hbm [thread:$0]  %s2043, 1024, %s2045, [#allocation4], 64, 64, 4
    $region61: #{tpu_custom_call.1} parent=1 // pred_fallthru
      _
    // Predicated region
    $region62: #{tpu_custom_call.1} parent=1 // pred_check
      _
    $region63: #{tpu_custom_call.1} parent=1 // pred_check_branch
      %2052 = sbr.rel (0) target = $region65
    $region64: #{tpu_custom_call.1} parent=1 // pred_region
      %2054 = dma.done [#allocation4], 1024
    $region65: #{tpu_custom_call.1} parent=1 // pred_fallthru
      _
    %2055 = vsyncpa [#allocation3], 1
    %2056 = vsyncpa [#allocation6], 1
    %2057 = vsyncpa [#allocation9], 1
    %2058 = vsyncpa [#allocation4], 1

</llo_original>
